<compile_context>
chip_gen: v7x
topology: tpu7x:2x2x1
jax: 0.10.0
libtpu: 0.0.40
codegen_flags: <defaults>
</compile_context>

<pallas_src>
import math
import functools

import numpy as np
import jax
import jax.numpy as jnp
from jax.experimental import pallas as pl
from jax.experimental.pallas import tpu as pltpu


def _self_attention_kernel(x_ref, gamma_ref, beta_ref, gdown_ref, gup_ref,
                           wqkv_ref, wout_ref, bout_ref, o_ref,
                           *, n_head, channel, block_batch, spatial, kv_tile, eps=1e-5):
    bb, S, C = block_batch, spatial, channel
    M = bb * S
    hd = C // n_head
    n_kv = S // kv_tile

    x = x_ref[...].astype(jnp.float32)                 # (M, C)
    x3 = x.reshape(bb, S, C)                           # free split (S % 8 == 0)

    # ---- GroupNorm: per-image group stats (two-pass variance for robustness) ----
    mean_c = jnp.mean(x3, axis=1)                      # (bb, C) spatial mean per channel
    gdown = gdown_ref[...]                             # (C, G)  in-group averaging
    gup = gup_ref[...]                                 # (G, C)  broadcast back to channels
    g_mean = jnp.dot(jnp.dot(mean_c, gdown, preferred_element_type=jnp.float32),
                     gup, preferred_element_type=jnp.float32)            # (bb, C)
    xc = x3 - g_mean[:, None, :]                                         # centered
    var_c = jnp.mean(xc * xc, axis=1)                                    # (bb, C)
    g_var = jnp.dot(jnp.dot(var_c, gdown, preferred_element_type=jnp.float32),
                    gup, preferred_element_type=jnp.float32)             # (bb, C)
    scale = jax.lax.rsqrt(g_var + eps) * gamma_ref[...]                  # (bb, C)
    xn = xc * scale[:, None, :] + beta_ref[...]                          # (bb, S, C) f32

    # ---- fused QKV projection: one lane-dense (M,C)x(C,3C) MXU matmul ----
    # fused weight columns are ordered [q | k | v]; within each block: h*hd + d.
    # The 1/sqrt(C) attention scale is pre-folded into the q columns (wrapper).
    xn16 = xn.reshape(M, C).astype(jnp.bfloat16)
    qkv = jnp.dot(xn16, wqkv_ref[...], preferred_element_type=jnp.float32)   # (M, 3C) f32
    qkv = qkv.astype(jnp.bfloat16).reshape(bb, S, 3 * C)

    # ---- attention: per head, KV-tiled online softmax (stats/accumulator in f32) ----
    ctx_heads = []
    for h in range(n_head):                                    # static, small unroll
        qh = qkv[:, :, h * hd:(h + 1) * hd]                    # (bb, S, hd) bf16 (scale folded)
        kh = qkv[:, :, C + h * hd:C + (h + 1) * hd]
        vh = qkv[:, :, 2 * C + h * hd:2 * C + (h + 1) * hd]
        m_i = jnp.full((bb, S, 1), -jnp.inf, jnp.float32)
        l_i = jnp.zeros((bb, S, 1), jnp.float32)
        acc = jnp.zeros((bb, S, hd), jnp.float32)
        for t in range(n_kv):                                  # static KV-chunk loop
            ks = kh[:, t * kv_tile:(t + 1) * kv_tile, :]       # (bb, Tk, hd)
            vs = vh[:, t * kv_tile:(t + 1) * kv_tile, :]
            s = jnp.einsum('bqd,bkd->bqk', qh, ks,
                           preferred_element_type=jnp.float32)            # (bb, S, Tk) f32
            m_new = jnp.maximum(m_i, jnp.max(s, axis=-1, keepdims=True))
            alpha = jnp.exp(m_i - m_new)
            p = jnp.exp(s - m_new)
            l_i = alpha * l_i + jnp.sum(p, axis=-1, keepdims=True)
            acc = alpha * acc + jnp.einsum('bqk,bkd->bqd', p.astype(jnp.bfloat16), vs,
                                           preferred_element_type=jnp.float32)
            m_i = m_new
        ctx_heads.append(acc * pl.reciprocal(l_i, approx=True))           # (bb, S, hd) f32

    # head-concatenated context, channel order h*hd + d (matches out-conv input channels)
    ctx16 = jnp.concatenate(ctx_heads, axis=-1).reshape(M, C).astype(jnp.bfloat16)

    # ---- fused output projection (K = C) + bias + residual ----
    y = jnp.dot(ctx16, wout_ref[...], preferred_element_type=jnp.float32) + bout_ref[...]
    o_ref[...] = (y + x).astype(o_ref.dtype)


def _vmem_capacity_bytes():
    try:
        return int(pltpu.get_tpu_info().vmem_capacity_bytes)
    except Exception:
        return 64 * 1024 * 1024      # conservative default (v7x per-TensorCore VMEM)


def _choose_kv_tile(S, bb, budget_bytes=4 << 20):
    """Largest divisor of S keeping one chunk's f32 scores+probs under budget."""
    divisors = [d for d in range(1, S + 1) if S % d == 0]
    fits = [d for d in divisors if 2 * bb * S * d * 4 <= budget_bytes] or [1]
    for align in (128, 8, 1):        # prefer lane-dense, then sublane-aligned chunks
        cand = [d for d in fits if d % align == 0]
        if cand:
            return max(cand)
    return 1


def _kernel_vmem_estimate(bb, S, C, n_head, hd, kv_tile, act_bytes=4):
    """Rough per-grid-step VMEM footprint (bytes)."""
    M = bb * S
    est = 0
    est += 2 * 2 * M * C * act_bytes         # double-buffered x / out blocks
    est += 2 * (3 * C * C + C * C) * 2       # double-buffered bf16 weight blocks
    est += 3 * M * C * 4                     # x (f32) / centered / normalized copies
    est += M * 3 * C * (4 + 2)               # qkv f32 accumulator + bf16 copy
    est += 2 * bb * S * kv_tile * 4          # one chunk of scores + probs (f32)
    est += 2 * M * hd * 4                    # per-head accumulator / ctx chunk
    est += 2 * M * C * 4                     # concatenated ctx + projected y
    return est


def _choose_block_batch(B, S, C, n_head, hd, vmem_cap):
    """Fuse images per grid step: large enough M to amortize serial grid overhead and fill the
    MXU, small enough to fit the VMEM budget; prefer an even grid count (v7x has 2 TensorCores,
    and evenness costs nothing on 1-TC v5e/v6e)."""
    divisors = [d for d in range(1, B + 1) if B % d == 0]
    target_rows = 1024

    def fits(bb):
        kvt = _choose_kv_tile(S, bb)
        return 2 * _kernel_vmem_estimate(bb, S, C, n_head, hd, kvt) <= vmem_cap

    ok = [d for d in divisors if d * S <= max(S, target_rows) and fits(d)] or [1]
    even = [d for d in ok if (B // d) % 2 == 0]
    return max(even) if even else max(ok)


def self_attention_pallas(x_nchw, params, *, n_head, norm_groups, block_batch=None):
    B, C, H, W = x_nchw.shape
    S = H * W
    assert C % n_head == 0 and C % norm_groups == 0
    hd = C // n_head

    capacity = _vmem_capacity_bytes()
    vmem_cap = int(0.6 * capacity)           # headroom for compiler-internal scratch

    bb = (_choose_block_batch(B, S, C, n_head, hd, vmem_cap)
          if block_batch is None else block_batch)
    assert B % bb == 0
    grid = B // bb
    M = bb * S
    kv_tile = _choose_kv_tile(S, bb)

    # NCHW -> (B*S, C) rows (channels-last).
    x2d = jnp.transpose(x_nchw, (0, 2, 3, 1)).reshape(B * S, C)

    # Group-average matrices (C,G)/(G,C) for the GroupNorm statistics.
    cg = C // norm_groups
    gdown_np = np.zeros((C, norm_groups), np.float32)
    gup_np = np.zeros((norm_groups, C), np.float32)
    for g in range(norm_groups):
        gdown_np[g * cg:(g + 1) * cg, g] = 1.0 / cg
        gup_np[g, g * cg:(g + 1) * cg] = 1.0
    gdown = jnp.asarray(gdown_np)
    gup = jnp.asarray(gup_np)

    gamma = params["gn_weight"].reshape(1, C).astype(jnp.float32)
    beta = params["gn_bias"].reshape(1, C).astype(jnp.float32)

    # Fused qkv conv weight (3C, C_in) -> (C_in, 3C); column j = t*C + h*hd + d, t in {q,k,v}.
    # NOTE: the module scales scores by 1/sqrt(channel) (not 1/sqrt(head_dim)); folded into W_q.
    wqkv4 = params["qkv_weight"].reshape(n_head, 3, hd, C)               # [h, t, d, c_in]
    wqkv_f = jnp.transpose(wqkv4, (3, 1, 0, 2)).reshape(C, 3 * C)
    qscale = jnp.concatenate([jnp.full((C,), 1.0 / math.sqrt(C), jnp.float32),
                              jnp.ones((2 * C,), jnp.float32)])
    wqkv_f = (wqkv_f * qscale[None, :]).astype(jnp.bfloat16)

    # Out conv weight (C_out, C_in) -> (C_in, C_out); input channel = h*hd + d matches the
    # head-concatenated context produced by the kernel.
    wout_f = jnp.transpose(params["out_weight"]).astype(jnp.bfloat16)
    bout = params["out_bias"].reshape(1, C).astype(jnp.float32)

    kernel = functools.partial(_self_attention_kernel, n_head=n_head, channel=C,
                               block_batch=bb, spatial=S, kv_tile=kv_tile)

    # Advisory cost estimate for XLA scheduling around the custom call.
    flops = int(2 * B * S * C * 3 * C           # fused qkv projection
                + 4 * B * n_head * S * S * hd   # q@k^T and p@v
                + 2 * B * S * C * C)            # fused out projection
    transcendentals = int(B * n_head * S * S)
    weight_arrs = (gamma, beta, gdown, gup, wqkv_f, wout_f, bout)
    bytes_accessed = int(2 * x2d.size * x2d.dtype.itemsize
                         + sum(int(a.size) * a.dtype.itemsize for a in weight_arrs))

    est = _kernel_vmem_estimate(bb, S, C, n_head, hd, kv_tile,
                                act_bytes=x2d.dtype.itemsize)
    vmem_limit = int(min(max(2 * est, 16 << 20), vmem_cap))

    out2d = pl.pallas_call(
        kernel,
        out_shape=jax.ShapeDtypeStruct((B * S, C), x_nchw.dtype),
        grid=(grid,),
        in_specs=[
            pl.BlockSpec((M, C), lambda i: (i, 0)),                 # x rows
            pl.BlockSpec((1, C), lambda i: (0, 0)),                 # gamma
            pl.BlockSpec((1, C), lambda i: (0, 0)),                 # beta
            pl.BlockSpec((C, norm_groups), lambda i: (0, 0)),       # group down-average
            pl.BlockSpec((norm_groups, C), lambda i: (0, 0)),       # group up-broadcast
            pl.BlockSpec((C, 3 * C), lambda i: (0, 0)),             # fused W_qkv (q pre-scaled)
            pl.BlockSpec((C, C), lambda i: (0, 0)),                 # W_out
            pl.BlockSpec((1, C), lambda i: (0, 0)),                 # b_out
        ],
        out_specs=pl.BlockSpec((M, C), lambda i: (i, 0)),
        compiler_params=pltpu.CompilerParams(
            dimension_semantics=("parallel",),
            vmem_limit_bytes=vmem_limit),
        cost_estimate=pl.CostEstimate(flops=flops,
                                      transcendentals=transcendentals,
                                      bytes_accessed=bytes_accessed),
    )(x2d, gamma, beta, gdown, gup, wqkv_f, wout_f, bout)

    return jnp.transpose(out2d.reshape(B, H, W, C), (0, 3, 1, 2))


def self_attention_reference(x, params, *, n_head, norm_groups, eps=1e-5):
    """Pure-JAX f32 replica of the PyTorch forward pass (NCHW)."""
    B, C, H, W = x.shape
    hd = C // n_head
    xg = x.reshape(B, norm_groups, C // norm_groups, H, W)
    mean = xg.mean(axis=(2, 3, 4), keepdims=True)
    var = ((xg - mean) ** 2).mean(axis=(2, 3, 4), keepdims=True)
    xn = ((xg - mean) / jnp.sqrt(var + eps)).reshape(B, C, H, W)
    xn = xn * params["gn_weight"][None, :, None, None] + params["gn_bias"][None, :, None, None]
    qkv = jnp.einsum('oc,bchw->bohw', params["qkv_weight"], xn).reshape(B, n_head, 3 * hd, H, W)
    q, k, v = qkv[:, :, :hd], qkv[:, :, hd:2 * hd], qkv[:, :, 2 * hd:]
    attn = jnp.einsum('bnchw,bncyx->bnhwyx', q, k) / math.sqrt(C)
    attn = jax.nn.softmax(attn.reshape(B, n_head, H, W, -1), axis=-1)
    attn = attn.reshape(B, n_head, H, W, H, W)
    out = jnp.einsum('bnhwyx,bncyx->bnchw', attn, v).reshape(B, C, H, W)
    out = jnp.einsum('oc,bchw->bohw', params["out_weight"], out) \
        + params["out_bias"][None, :, None, None]
    return out + x


if __name__ == "__main__":
    B, C, H, W = 2, 32, 8, 8
    n_head, norm_groups = 2, 8

    key = jax.random.PRNGKey(0)
    k_x, k_g, k_b, k_qkv, k_ow, k_ob = jax.random.split(key, 6)

    x = jax.random.normal(k_x, (B, C, H, W), jnp.float32)
    params = {
        "gn_weight": 1.0 + 0.1 * jax.random.normal(k_g, (C,), jnp.float32),
        "gn_bias": 0.1 * jax.random.normal(k_b, (C,), jnp.float32),
        "qkv_weight": 0.1 * jax.random.normal(k_qkv, (3 * C, C), jnp.float32),  # Conv2d(C,3C,1,bias=False)
        "out_weight": 0.1 * jax.random.normal(k_ow, (C, C), jnp.float32),       # Conv2d(C,C,1)
        "out_bias": 0.1 * jax.random.normal(k_ob, (C,), jnp.float32),
    }

    y = self_attention_pallas(x, params, n_head=n_head, norm_groups=norm_groups)
    y = jax.block_until_ready(y)

    y_ref = self_attention_reference(x, params, n_head=n_head, norm_groups=norm_groups)
    # bf16 MXU operands with f32 accumulation -> relaxed tolerance vs the f32 reference
    np.testing.assert_allclose(np.asarray(y), np.asarray(y_ref), rtol=2e-2, atol=2e-2)

    print("KERNEL_OK")
</pallas_src>

<mosaic_0001>
module attributes {stable_mosaic.version = 11 : i64} {
  func.func @_self_attention_kernel(%arg0: i32, %arg1: memref<64x32xf32, #tpu.memory_space<vmem>>, %arg2: memref<1x32xf32, #tpu.memory_space<vmem>>, %arg3: memref<1x32xf32, #tpu.memory_space<vmem>>, %arg4: memref<32x8xf32, #tpu.memory_space<vmem>>, %arg5: memref<8x32xf32, #tpu.memory_space<vmem>>, %arg6: memref<32x96xbf16, #tpu.memory_space<vmem>>, %arg7: memref<32x32xbf16, #tpu.memory_space<vmem>>, %arg8: memref<1x32xf32, #tpu.memory_space<vmem>>, %arg9: memref<64x32xf32, #tpu.memory_space<vmem>>) attributes {dimension_semantics = [#tpu.dimension_semantics<parallel>], iteration_bounds = array<i64: 2>, scalar_prefetch = 0 : i64, scratch_operands = 0 : i64, tpu.core_type = #tpu.core_type<tc>, window_params = [{transform_indices = @transform_0, window_bounds = array<i64: 64, 32>}, {pipeline_mode = #tpu.pipeline_mode<synchronous>, transform_indices = @transform_1, window_bounds = array<i64: 1, 32>}, {pipeline_mode = #tpu.pipeline_mode<synchronous>, transform_indices = @transform_2, window_bounds = array<i64: 1, 32>}, {pipeline_mode = #tpu.pipeline_mode<synchronous>, transform_indices = @transform_3, window_bounds = array<i64: 32, 8>}, {pipeline_mode = #tpu.pipeline_mode<synchronous>, transform_indices = @transform_4, window_bounds = array<i64: 8, 32>}, {pipeline_mode = #tpu.pipeline_mode<synchronous>, transform_indices = @transform_5, window_bounds = array<i64: 32, 96>}, {pipeline_mode = #tpu.pipeline_mode<synchronous>, transform_indices = @transform_6, window_bounds = array<i64: 32, 32>}, {pipeline_mode = #tpu.pipeline_mode<synchronous>, transform_indices = @transform_7, window_bounds = array<i64: 1, 32>}, {transform_indices = @transform_8, window_bounds = array<i64: 64, 32>}]} {
    %c0 = arith.constant 0 : index
    %c0_0 = arith.constant 0 : index
    %0 = vector.load %arg1[%c0, %c0_0] : memref<64x32xf32, #tpu.memory_space<vmem>>, vector<64x32xf32>
    %1 = vector.shape_cast %0 : vector<64x32xf32> to vector<1x64x32xf32>
    %cst = arith.constant dense<0.000000e+00> : vector<1x32xf32>
    %2 = vector.multi_reduction <add>, %1, %cst [1] : vector<1x64x32xf32> to vector<1x32xf32>
    %cst_1 = arith.constant 6.400000e+01 : f32
    %3 = vector.broadcast %cst_1 : f32 to vector<1x32xf32>
    %4 = arith.divf %2, %3 : vector<1x32xf32>
    %c0_2 = arith.constant 0 : index
    %c0_3 = arith.constant 0 : index
    %5 = vector.load %arg4[%c0_2, %c0_3] : memref<32x8xf32, #tpu.memory_space<vmem>>, vector<32x8xf32>
    %c0_4 = arith.constant 0 : index
    %c0_5 = arith.constant 0 : index
    %6 = vector.load %arg5[%c0_4, %c0_5] : memref<8x32xf32, #tpu.memory_space<vmem>>, vector<8x32xf32>
    %cst_6 = arith.constant dense<0.000000e+00> : vector<1x8xf32>
    %7 = tpu.matmul %4, %5, %cst_6 {dimension_numbers = #tpu.dot_dimension_numbers<[1], [0], [0], [1], [0, 0, 1, 1], [], []>} : vector<1x32xf32>, vector<32x8xf32>, vector<1x8xf32> -> vector<1x8xf32>
    %cst_7 = arith.constant dense<0.000000e+00> : vector<1x32xf32>
    %8 = tpu.matmul %7, %6, %cst_7 {dimension_numbers = #tpu.dot_dimension_numbers<[1], [0], [0], [1], [0, 0, 1, 1], [], []>} : vector<1x8xf32>, vector<8x32xf32>, vector<1x32xf32> -> vector<1x32xf32>
    %9 = vector.shape_cast %8 : vector<1x32xf32> to vector<1x1x32xf32>
    %10 = vector.broadcast %9 : vector<1x1x32xf32> to vector<1x64x32xf32>
    %11 = arith.subf %1, %10 : vector<1x64x32xf32>
    %12 = arith.mulf %11, %11 : vector<1x64x32xf32>
    %cst_8 = arith.constant dense<0.000000e+00> : vector<1x32xf32>
    %13 = vector.multi_reduction <add>, %12, %cst_8 [1] : vector<1x64x32xf32> to vector<1x32xf32>
    %cst_9 = arith.constant 6.400000e+01 : f32
    %14 = vector.broadcast %cst_9 : f32 to vector<1x32xf32>
    %15 = arith.divf %13, %14 : vector<1x32xf32>
    %cst_10 = arith.constant dense<0.000000e+00> : vector<1x8xf32>
    %16 = tpu.matmul %15, %5, %cst_10 {dimension_numbers = #tpu.dot_dimension_numbers<[1], [0], [0], [1], [0, 0, 1, 1], [], []>} : vector<1x32xf32>, vector<32x8xf32>, vector<1x8xf32> -> vector<1x8xf32>
    %cst_11 = arith.constant dense<0.000000e+00> : vector<1x32xf32>
    %17 = tpu.matmul %16, %6, %cst_11 {dimension_numbers = #tpu.dot_dimension_numbers<[1], [0], [0], [1], [0, 0, 1, 1], [], []>} : vector<1x8xf32>, vector<8x32xf32>, vector<1x32xf32> -> vector<1x32xf32>
    %cst_12 = arith.constant 9.99999974E-6 : f32
    %18 = vector.broadcast %cst_12 : f32 to vector<1x32xf32>
    %19 = arith.addf %17, %18 : vector<1x32xf32>
    %20 = math.rsqrt %19 : vector<1x32xf32>
    %c0_13 = arith.constant 0 : index
    %c0_14 = arith.constant 0 : index
    %21 = vector.load %arg2[%c0_13, %c0_14] : memref<1x32xf32, #tpu.memory_space<vmem>>, vector<1x32xf32>
    %22 = arith.mulf %20, %21 : vector<1x32xf32>
    %23 = vector.shape_cast %22 : vector<1x32xf32> to vector<1x1x32xf32>
    %24 = vector.broadcast %23 : vector<1x1x32xf32> to vector<1x64x32xf32>
    %25 = arith.mulf %11, %24 : vector<1x64x32xf32>
    %c0_15 = arith.constant 0 : index
    %c0_16 = arith.constant 0 : index
    %26 = vector.load %arg3[%c0_15, %c0_16] : memref<1x32xf32, #tpu.memory_space<vmem>>, vector<1x32xf32>
    %27 = vector.shape_cast %26 : vector<1x32xf32> to vector<1x1x32xf32>
    %28 = vector.broadcast %27 : vector<1x1x32xf32> to vector<1x64x32xf32>
    %29 = arith.addf %25, %28 : vector<1x64x32xf32>
    %30 = vector.shape_cast %29 : vector<1x64x32xf32> to vector<64x32xf32>
    %31 = arith.truncf %30 : vector<64x32xf32> to vector<64x32xbf16>
    %c0_17 = arith.constant 0 : index
    %c0_18 = arith.constant 0 : index
    %32 = vector.load %arg6[%c0_17, %c0_18] : memref<32x96xbf16, #tpu.memory_space<vmem>>, vector<32x96xbf16>
    %cst_19 = arith.constant dense<0.000000e+00> : vector<64x96xf32>
    %33 = tpu.matmul %31, %32, %cst_19 {dimension_numbers = #tpu.dot_dimension_numbers<[1], [0], [0], [1], [0, 0, 1, 1], [], []>} : vector<64x32xbf16>, vector<32x96xbf16>, vector<64x96xf32> -> vector<64x96xf32>
    %34 = arith.truncf %33 : vector<64x96xf32> to vector<64x96xbf16>
    %35 = vector.shape_cast %34 : vector<64x96xbf16> to vector<1x64x96xbf16>
    %36 = vector.extract_strided_slice %35 {offsets = [0, 0, 0], sizes = [1, 64, 16], strides = [1, 1, 1]} : vector<1x64x96xbf16> to vector<1x64x16xbf16>
    %37 = vector.extract_strided_slice %35 {offsets = [0, 0, 32], sizes = [1, 64, 16], strides = [1, 1, 1]} : vector<1x64x96xbf16> to vector<1x64x16xbf16>
    %38 = vector.extract_strided_slice %35 {offsets = [0, 0, 64], sizes = [1, 64, 16], strides = [1, 1, 1]} : vector<1x64x96xbf16> to vector<1x64x16xbf16>
    %cst_20 = arith.constant 0xFF800000 : f32
    %39 = vector.broadcast %cst_20 : f32 to vector<1x64x1xf32>
    %cst_21 = arith.constant 0.000000e+00 : f32
    %40 = vector.broadcast %cst_21 : f32 to vector<1x64x1xf32>
    %cst_22 = arith.constant 0.000000e+00 : f32
    %41 = vector.broadcast %cst_22 : f32 to vector<1x64x16xf32>
    "tpu.trace_start"() <{level = 10 : i32, message = "bqd,bkd->bqk"}> : () -> ()
    %cst_23 = arith.constant dense<0.000000e+00> : vector<1x64x64xf32>
    %42 = tpu.matmul %36, %37, %cst_23 {dimension_numbers = #tpu.dot_dimension_numbers<[2], [2], [1], [1], [0, 0, 0, 1, 1, 1], [0], [0]>} : vector<1x64x16xbf16>, vector<1x64x16xbf16>, vector<1x64x64xf32> -> vector<1x64x64xf32>
    "tpu.trace_stop"() : () -> ()
    %cst_24 = arith.constant dense<0xFF800000> : vector<1x64xf32>
    %43 = vector.multi_reduction <maximumf>, %42, %cst_24 [2] : vector<1x64x64xf32> to vector<1x64xf32>
    %44 = vector.shape_cast %43 : vector<1x64xf32> to vector<1x64x1xf32>
    %45 = arith.maximumf %39, %44 : vector<1x64x1xf32>
    %46 = arith.subf %39, %45 : vector<1x64x1xf32>
    %47 = math.exp %46 : vector<1x64x1xf32>
    %48 = vector.broadcast %45 : vector<1x64x1xf32> to vector<1x64x64xf32>
    %49 = arith.subf %42, %48 : vector<1x64x64xf32>
    %50 = math.exp %49 : vector<1x64x64xf32>
    %51 = arith.mulf %47, %40 : vector<1x64x1xf32>
    %cst_25 = arith.constant dense<0.000000e+00> : vector<1x64xf32>
    %52 = vector.multi_reduction <add>, %50, %cst_25 [2] : vector<1x64x64xf32> to vector<1x64xf32>
    %53 = vector.shape_cast %52 : vector<1x64xf32> to vector<1x64x1xf32>
    %54 = arith.addf %51, %53 : vector<1x64x1xf32>
    %55 = vector.broadcast %47 : vector<1x64x1xf32> to vector<1x64x16xf32>
    %56 = arith.mulf %55, %41 : vector<1x64x16xf32>
    %57 = arith.truncf %50 : vector<1x64x64xf32> to vector<1x64x64xbf16>
    "tpu.trace_start"() <{level = 10 : i32, message = "bqk,bkd->bqd"}> : () -> ()
    %cst_26 = arith.constant dense<0.000000e+00> : vector<1x64x16xf32>
    %58 = tpu.matmul %57, %38, %cst_26 {dimension_numbers = #tpu.dot_dimension_numbers<[2], [1], [1], [2], [0, 0, 0, 1, 1, 2], [0], [0]>} : vector<1x64x64xbf16>, vector<1x64x16xbf16>, vector<1x64x16xf32> -> vector<1x64x16xf32>
    "tpu.trace_stop"() : () -> ()
    %59 = arith.addf %56, %58 : vector<1x64x16xf32>
    %60 = tpu.reciprocal %54 {approx = true} : vector<1x64x1xf32> -> vector<1x64x1xf32>
    %61 = vector.broadcast %60 : vector<1x64x1xf32> to vector<1x64x16xf32>
    %62 = arith.mulf %59, %61 : vector<1x64x16xf32>
    %63 = vector.extract_strided_slice %35 {offsets = [0, 0, 16], sizes = [1, 64, 16], strides = [1, 1, 1]} : vector<1x64x96xbf16> to vector<1x64x16xbf16>
    %64 = vector.extract_strided_slice %35 {offsets = [0, 0, 48], sizes = [1, 64, 16], strides = [1, 1, 1]} : vector<1x64x96xbf16> to vector<1x64x16xbf16>
    %65 = vector.extract_strided_slice %35 {offsets = [0, 0, 80], sizes = [1, 64, 16], strides = [1, 1, 1]} : vector<1x64x96xbf16> to vector<1x64x16xbf16>
    %cst_27 = arith.constant 0xFF800000 : f32
    %66 = vector.broadcast %cst_27 : f32 to vector<1x64x1xf32>
    %cst_28 = arith.constant 0.000000e+00 : f32
    %67 = vector.broadcast %cst_28 : f32 to vector<1x64x1xf32>
    %cst_29 = arith.constant 0.000000e+00 : f32
    %68 = vector.broadcast %cst_29 : f32 to vector<1x64x16xf32>
    "tpu.trace_start"() <{level = 10 : i32, message = "bqd,bkd->bqk"}> : () -> ()
    %cst_30 = arith.constant dense<0.000000e+00> : vector<1x64x64xf32>
    %69 = tpu.matmul %63, %64, %cst_30 {dimension_numbers = #tpu.dot_dimension_numbers<[2], [2], [1], [1], [0, 0, 0, 1, 1, 1], [0], [0]>} : vector<1x64x16xbf16>, vector<1x64x16xbf16>, vector<1x64x64xf32> -> vector<1x64x64xf32>
    "tpu.trace_stop"() : () -> ()
    %cst_31 = arith.constant dense<0xFF800000> : vector<1x64xf32>
    %70 = vector.multi_reduction <maximumf>, %69, %cst_31 [2] : vector<1x64x64xf32> to vector<1x64xf32>
    %71 = vector.shape_cast %70 : vector<1x64xf32> to vector<1x64x1xf32>
    %72 = arith.maximumf %66, %71 : vector<1x64x1xf32>
    %73 = arith.subf %66, %72 : vector<1x64x1xf32>
    %74 = math.exp %73 : vector<1x64x1xf32>
    %75 = vector.broadcast %72 : vector<1x64x1xf32> to vector<1x64x64xf32>
    %76 = arith.subf %69, %75 : vector<1x64x64xf32>
    %77 = math.exp %76 : vector<1x64x64xf32>
    %78 = arith.mulf %74, %67 : vector<1x64x1xf32>
    %cst_32 = arith.constant dense<0.000000e+00> : vector<1x64xf32>
    %79 = vector.multi_reduction <add>, %77, %cst_32 [2] : vector<1x64x64xf32> to vector<1x64xf32>
    %80 = vector.shape_cast %79 : vector<1x64xf32> to vector<1x64x1xf32>
    %81 = arith.addf %78, %80 : vector<1x64x1xf32>
    %82 = vector.broadcast %74 : vector<1x64x1xf32> to vector<1x64x16xf32>
    %83 = arith.mulf %82, %68 : vector<1x64x16xf32>
    %84 = arith.truncf %77 : vector<1x64x64xf32> to vector<1x64x64xbf16>
    "tpu.trace_start"() <{level = 10 : i32, message = "bqk,bkd->bqd"}> : () -> ()
    %cst_33 = arith.constant dense<0.000000e+00> : vector<1x64x16xf32>
    %85 = tpu.matmul %84, %65, %cst_33 {dimension_numbers = #tpu.dot_dimension_numbers<[2], [1], [1], [2], [0, 0, 0, 1, 1, 2], [0], [0]>} : vector<1x64x64xbf16>, vector<1x64x16xbf16>, vector<1x64x16xf32> -> vector<1x64x16xf32>
    "tpu.trace_stop"() : () -> ()
    %86 = arith.addf %83, %85 : vector<1x64x16xf32>
    %87 = tpu.reciprocal %81 {approx = true} : vector<1x64x1xf32> -> vector<1x64x1xf32>
    %88 = vector.broadcast %87 : vector<1x64x1xf32> to vector<1x64x16xf32>
    %89 = arith.mulf %86, %88 : vector<1x64x16xf32>
    %90 = tpu.concatenate %62, %89 in 2 : vector<1x64x16xf32>, vector<1x64x16xf32> -> vector<1x64x32xf32>
    %91 = vector.shape_cast %90 : vector<1x64x32xf32> to vector<64x32xf32>
    %92 = arith.truncf %91 : vector<64x32xf32> to vector<64x32xbf16>
    %c0_34 = arith.constant 0 : index
    %c0_35 = arith.constant 0 : index
    %93 = vector.load %arg7[%c0_34, %c0_35] : memref<32x32xbf16, #tpu.memory_space<vmem>>, vector<32x32xbf16>
    %cst_36 = arith.constant dense<0.000000e+00> : vector<64x32xf32>
    %94 = tpu.matmul %92, %93, %cst_36 {dimension_numbers = #tpu.dot_dimension_numbers<[1], [0], [0], [1], [0, 0, 1, 1], [], []>} : vector<64x32xbf16>, vector<32x32xbf16>, vector<64x32xf32> -> vector<64x32xf32>
    %c0_37 = arith.constant 0 : index
    %c0_38 = arith.constant 0 : index
    %95 = vector.load %arg8[%c0_37, %c0_38] : memref<1x32xf32, #tpu.memory_space<vmem>>, vector<1x32xf32>
    %96 = vector.broadcast %95 : vector<1x32xf32> to vector<64x32xf32>
    %97 = arith.addf %94, %96 : vector<64x32xf32>
    %98 = arith.addf %97, %0 : vector<64x32xf32>
    %c0_39 = arith.constant 0 : index
    %c0_40 = arith.constant 0 : index
    %99 = vector.load %arg9[%c0_39, %c0_40] : memref<64x32xf32, #tpu.memory_space<vmem>>, vector<64x32xf32>
    tpu.vector_store %arg9[%c0_39, %c0_40], %98 {strides = array<i32>} : memref<64x32xf32, #tpu.memory_space<vmem>>, vector<64x32xf32>,
    return
  }
  func.func @transform_0(%arg0: i32) -> (i32, i32) {
    %c0_i32 = arith.constant 0 : i32
    %c0_i32_0 = arith.constant 0 : i32
    return %arg0, %c0_i32 : i32, i32
  }
  func.func @transform_1(%arg0: i32) -> (i32, i32) {
    %c0_i32 = arith.constant 0 : i32
    %c0_i32_0 = arith.constant 0 : i32
    %c0_i32_1 = arith.constant 0 : i32
    return %c0_i32, %c0_i32_0 : i32, i32
  }
  func.func @transform_2(%arg0: i32) -> (i32, i32) {
    %c0_i32 = arith.constant 0 : i32
    %c0_i32_0 = arith.constant 0 : i32
    %c0_i32_1 = arith.constant 0 : i32
    return %c0_i32, %c0_i32_0 : i32, i32
  }
  func.func @transform_3(%arg0: i32) -> (i32, i32) {
    %c0_i32 = arith.constant 0 : i32
    %c0_i32_0 = arith.constant 0 : i32
    %c0_i32_1 = arith.constant 0 : i32
    return %c0_i32, %c0_i32_0 : i32, i32
  }
  func.func @transform_4(%arg0: i32) -> (i32, i32) {
    %c0_i32 = arith.constant 0 : i32
    %c0_i32_0 = arith.constant 0 : i32
    %c0_i32_1 = arith.constant 0 : i32
    return %c0_i32, %c0_i32_0 : i32, i32
  }
  func.func @transform_5(%arg0: i32) -> (i32, i32) {
    %c0_i32 = arith.constant 0 : i32
    %c0_i32_0 = arith.constant 0 : i32
    %c0_i32_1 = arith.constant 0 : i32
    return %c0_i32, %c0_i32_0 : i32, i32
  }
  func.func @transform_6(%arg0: i32) -> (i32, i32) {
    %c0_i32 = arith.constant 0 : i32
    %c0_i32_0 = arith.constant 0 : i32
    %c0_i32_1 = arith.constant 0 : i32
    return %c0_i32, %c0_i32_0 : i32, i32
  }
  func.func @transform_7(%arg0: i32) -> (i32, i32) {
    %c0_i32 = arith.constant 0 : i32
    %c0_i32_0 = arith.constant 0 : i32
    %c0_i32_1 = arith.constant 0 : i32
    return %c0_i32, %c0_i32_0 : i32, i32
  }
  func.func @transform_8(%arg0: i32) -> (i32, i32) {
    %c0_i32 = arith.constant 0 : i32
    %c0_i32_0 = arith.constant 0 : i32
    return %arg0, %c0_i32 : i32, i32
  }
}

</mosaic_0001>

<llo_original>
// kernel: tpu_custom_call.1
$region0: #{tpu_custom_call.1}
  #allocation0 [shape = 'u32[]', space=smem, size = 0x4, offset = 0x4, fixed_abs, tag = 'smem constant byte address 0x4 - core index']
  #allocation1 [shape = 'u32[144,128]{1,0:T(1,128)}', space=vmem, size = 0x12000, scoped, tag = 'internal scratch']
  %s0 = inlined_call_operand.vmem [shape: f32[128,32], index: 0, kind: input, shape index: {}]
  %s1 = inlined_call_operand.vmem [shape: f32[1,32], index: 1, kind: input, shape index: {}]
  %s2 = inlined_call_operand.vmem [shape: f32[1,32], index: 2, kind: input, shape index: {}]
  %s3 = inlined_call_operand.vmem [shape: f32[32,8], index: 3, kind: input, shape index: {}]
  %s4 = inlined_call_operand.vmem [shape: f32[8,32], index: 4, kind: input, shape index: {}]
  %s5 = inlined_call_operand.vmem [shape: bf16[32,96], index: 5, kind: input, shape index: {}]
  %s6 = inlined_call_operand.vmem [shape: bf16[32,32], index: 6, kind: input, shape index: {}]
  %s7 = inlined_call_operand.vmem [shape: f32[1,32], index: 7, kind: input, shape index: {}]
  %s8 = inlined_call_operand.vmem [shape: f32[128,32], index: 8, kind: output, shape index: {}]
  %s9 = sld [smem:[#allocation0]]
  $region65: #{tpu_custom_call.1} parent=0
    _
  %s11 = ssub.s32 1, %s9
  %s12 = scalar_select 0, %s11, %s9
  loop: start=0, step=1, limit=4
  $region2: #{tpu_custom_call.1} parent=0 // loop_pre_header
    _
  $region3: #{tpu_custom_call.1} parent=0 // loop_header
    %s14 = sphi 0, %s18
    %p15 = scmp.ge.s32.totalorder %s14, 4
    %s24 = sphi 0, %s26
    %s27 = sphi 0, %s24
    %s28 = sphi 0, %s27
    %s44 = sphi 0, %s28
    %s48 = sphi 0, %s48
    %s50 = sphi 0, %s48
    %s51 = sphi 0, %s50
    %s65 = sphi 0, %s51
    %s69 = sphi 0, %s69
    %s71 = sphi 0, %s69
    %s72 = sphi 0, %s71
    %s86 = sphi 0, %s72
    %s90 = sphi 0, %s90
    %s92 = sphi 0, %s90
    %s93 = sphi 0, %s92
    %s107 = sphi 0, %s93
    %s111 = sphi 0, %s111
    %s113 = sphi 0, %s111
    %s114 = sphi 0, %s113
    %s128 = sphi 0, %s114
    %s132 = sphi 0, %s132
    %s134 = sphi 0, %s132
    %s135 = sphi 0, %s134
    %s149 = sphi 0, %s135
    %s153 = sphi 0, %s153
    %s155 = sphi 0, %s153
    %s156 = sphi 0, %s155
    %s170 = sphi 0, %s156
    %s174 = sphi 0, %s174
    %s176 = sphi 0, %s174
    %s177 = sphi 0, %s176
    %s191 = sphi 0, %s177
    %s197 = sphi 0, %s199
    %s200 = sphi 0, %s197
    %s201 = sphi 0, %s200
    %s217 = sphi 0, %s201
  $region4: #{tpu_custom_call.1} parent=0 // loop_header_branch
    %17 = sbr.rel (%p15) target = $region8
  $region5: #{tpu_custom_call.1} parent=0 // loop_body
    %s19 = ssub.s32 %s14, 1
    %s20 = ssub.s32 %s14, 2
    %s21 = sadd.s32 %s14, 1
    %s22 = ssub.s32 %s14, %s21
    %p23 = scmp.eq.s32.totalorder %s22, 0
    %s25 = sadd.s32 %s24, 1
    %s26 = scalar_select %p23, %s24, %s25
    %p29 = pneg %p23
    %p30 = scmp.eq.s32.totalorder %s14, 1
    %p31 = por %p29, %p30
    %p32 = scmp.ne.s32.totalorder %s24, %s27
    %p33 = scmp.eq.s32.totalorder %s14, 0
    %p34 = por %p32, %p33
    %p35 = scmp.ne.s32.totalorder %s24, %s27
    %p36 = scmp.eq.s32.totalorder %s19, 1
    %p37 = por %p35, %p36
    %p38 = scmp.ne.s32.totalorder %s27, %s28
    %p39 = scmp.eq.s32.totalorder %s19, 0
    %p40 = por %p38, %p39
    %p41 = scmp.ne.s32.totalorder %s27, %s28
    %p42 = scmp.eq.s32.totalorder %s20, 1
    %p43 = por %p41, %p42
    %p45 = scmp.ne.s32.totalorder %s28, %s44
    %p46 = scmp.eq.s32.totalorder %s20, 0
    %p47 = por %p45, %p46
    %s49 = sadd.s32 %s48, 1
    %p52 = scmp.eq.s32.totalorder %s14, 1
    %p53 = scmp.ne.s32.totalorder %s48, %s50
    %p54 = scmp.eq.s32.totalorder %s14, 0
    %p55 = por %p53, %p54
    %p56 = scmp.ne.s32.totalorder %s48, %s50
    %p57 = scmp.eq.s32.totalorder %s19, 1
    %p58 = por %p56, %p57
    %p59 = scmp.ne.s32.totalorder %s50, %s51
    %p60 = scmp.eq.s32.totalorder %s19, 0
    %p61 = por %p59, %p60
    %p62 = scmp.ne.s32.totalorder %s50, %s51
    %p63 = scmp.eq.s32.totalorder %s20, 1
    %p64 = por %p62, %p63
    %p66 = scmp.ne.s32.totalorder %s51, %s65
    %p67 = scmp.eq.s32.totalorder %s20, 0
    %p68 = por %p66, %p67
    %s70 = sadd.s32 %s69, 1
    %p73 = scmp.eq.s32.totalorder %s14, 1
    %p74 = scmp.ne.s32.totalorder %s69, %s71
    %p75 = scmp.eq.s32.totalorder %s14, 0
    %p76 = por %p74, %p75
    %p77 = scmp.ne.s32.totalorder %s69, %s71
    %p78 = scmp.eq.s32.totalorder %s19, 1
    %p79 = por %p77, %p78
    %p80 = scmp.ne.s32.totalorder %s71, %s72
    %p81 = scmp.eq.s32.totalorder %s19, 0
    %p82 = por %p80, %p81
    %p83 = scmp.ne.s32.totalorder %s71, %s72
    %p84 = scmp.eq.s32.totalorder %s20, 1
    %p85 = por %p83, %p84
    %p87 = scmp.ne.s32.totalorder %s72, %s86
    %p88 = scmp.eq.s32.totalorder %s20, 0
    %p89 = por %p87, %p88
    %s91 = sadd.s32 %s90, 1
    %p94 = scmp.eq.s32.totalorder %s14, 1
    %p95 = scmp.ne.s32.totalorder %s90, %s92
    %p96 = scmp.eq.s32.totalorder %s14, 0
    %p97 = por %p95, %p96
    %p98 = scmp.ne.s32.totalorder %s90, %s92
    %p99 = scmp.eq.s32.totalorder %s19, 1
    %p100 = por %p98, %p99
    %p101 = scmp.ne.s32.totalorder %s92, %s93
    %p102 = scmp.eq.s32.totalorder %s19, 0
    %p103 = por %p101, %p102
    %p104 = scmp.ne.s32.totalorder %s92, %s93
    %p105 = scmp.eq.s32.totalorder %s20, 1
    %p106 = por %p104, %p105
    %p108 = scmp.ne.s32.totalorder %s93, %s107
    %p109 = scmp.eq.s32.totalorder %s20, 0
    %p110 = por %p108, %p109
    %s112 = sadd.s32 %s111, 1
    %p115 = scmp.eq.s32.totalorder %s14, 1
    %p116 = scmp.ne.s32.totalorder %s111, %s113
    %p117 = scmp.eq.s32.totalorder %s14, 0
    %p118 = por %p116, %p117
    %p119 = scmp.ne.s32.totalorder %s111, %s113
    %p120 = scmp.eq.s32.totalorder %s19, 1
    %p121 = por %p119, %p120
    %p122 = scmp.ne.s32.totalorder %s113, %s114
    %p123 = scmp.eq.s32.totalorder %s19, 0
    %p124 = por %p122, %p123
    %p125 = scmp.ne.s32.totalorder %s113, %s114
    %p126 = scmp.eq.s32.totalorder %s20, 1
    %p127 = por %p125, %p126
    %p129 = scmp.ne.s32.totalorder %s114, %s128
    %p130 = scmp.eq.s32.totalorder %s20, 0
    %p131 = por %p129, %p130
    %s133 = sadd.s32 %s132, 1
    %p136 = scmp.eq.s32.totalorder %s14, 1
    %p137 = scmp.ne.s32.totalorder %s132, %s134
    %p138 = scmp.eq.s32.totalorder %s14, 0
    %p139 = por %p137, %p138
    %p140 = scmp.ne.s32.totalorder %s132, %s134
    %p141 = scmp.eq.s32.totalorder %s19, 1
    %p142 = por %p140, %p141
    %p143 = scmp.ne.s32.totalorder %s134, %s135
    %p144 = scmp.eq.s32.totalorder %s19, 0
    %p145 = por %p143, %p144
    %p146 = scmp.ne.s32.totalorder %s134, %s135
    %p147 = scmp.eq.s32.totalorder %s20, 1
    %p148 = por %p146, %p147
    %p150 = scmp.ne.s32.totalorder %s135, %s149
    %p151 = scmp.eq.s32.totalorder %s20, 0
    %p152 = por %p150, %p151
    %s154 = sadd.s32 %s153, 1
    %p157 = scmp.eq.s32.totalorder %s14, 1
    %p158 = scmp.ne.s32.totalorder %s153, %s155
    %p159 = scmp.eq.s32.totalorder %s14, 0
    %p160 = por %p158, %p159
    %p161 = scmp.ne.s32.totalorder %s153, %s155
    %p162 = scmp.eq.s32.totalorder %s19, 1
    %p163 = por %p161, %p162
    %p164 = scmp.ne.s32.totalorder %s155, %s156
    %p165 = scmp.eq.s32.totalorder %s19, 0
    %p166 = por %p164, %p165
    %p167 = scmp.ne.s32.totalorder %s155, %s156
    %p168 = scmp.eq.s32.totalorder %s20, 1
    %p169 = por %p167, %p168
    %p171 = scmp.ne.s32.totalorder %s156, %s170
    %p172 = scmp.eq.s32.totalorder %s20, 0
    %p173 = por %p171, %p172
    %s175 = sadd.s32 %s174, 1
    %p178 = scmp.eq.s32.totalorder %s14, 1
    %p179 = scmp.ne.s32.totalorder %s174, %s176
    %p180 = scmp.eq.s32.totalorder %s14, 0
    %p181 = por %p179, %p180
    %p182 = scmp.ne.s32.totalorder %s174, %s176
    %p183 = scmp.eq.s32.totalorder %s19, 1
    %p184 = por %p182, %p183
    %p185 = scmp.ne.s32.totalorder %s176, %s177
    %p186 = scmp.eq.s32.totalorder %s19, 0
    %p187 = por %p185, %p186
    %p188 = scmp.ne.s32.totalorder %s176, %s177
    %p189 = scmp.eq.s32.totalorder %s20, 1
    %p190 = por %p188, %p189
    %p192 = scmp.ne.s32.totalorder %s177, %s191
    %p193 = scmp.eq.s32.totalorder %s20, 0
    %p194 = por %p192, %p193
    %s195 = ssub.s32 %s14, %s21
    %p196 = scmp.eq.s32.totalorder %s195, 0
    %s198 = sadd.s32 %s197, 1
    %s199 = scalar_select %p196, %s197, %s198
    %p202 = pneg %p196
    %p203 = scmp.eq.s32.totalorder %s14, 1
    %p204 = por %p202, %p203
    %p205 = scmp.ne.s32.totalorder %s197, %s200
    %p206 = scmp.eq.s32.totalorder %s14, 0
    %p207 = por %p205, %p206
    %p208 = scmp.ne.s32.totalorder %s197, %s200
    %p209 = scmp.eq.s32.totalorder %s19, 1
    %p210 = por %p208, %p209
    %p211 = scmp.ne.s32.totalorder %s200, %s201
    %p212 = scmp.eq.s32.totalorder %s19, 0
    %p213 = por %p211, %p212
    %p214 = scmp.ne.s32.totalorder %s200, %s201
    %p215 = scmp.eq.s32.totalorder %s20, 1
    %p216 = por %p214, %p215
    %p218 = scmp.ne.s32.totalorder %s201, %s217
    %p219 = scmp.eq.s32.totalorder %s20, 0
    %p220 = por %p218, %p219
    %p221 = scmp.le.s32.totalorder 1, %s14
    %p222 = scmp.lt.s32.totalorder %s14, 3
    %p223 = pnand %p221, %p222
    %p224 = pneg %p223
    // Predicated region
    $region9: #{tpu_custom_call.1} parent=5 // pred_check
      _
    $region10: #{tpu_custom_call.1} parent=5 // pred_check_branch
      %226 = sbr.rel (%p223) target = $region12
    $region11: #{tpu_custom_call.1} parent=5 // pred_region
      %s227 = ssub.s32 %s14, 1
      // Predicated region
      $region13: #{tpu_custom_call.1} parent=11 // pred_check
        %p228 = pneg %p61
      $region14: #{tpu_custom_call.1} parent=11 // pred_check_branch
        %230 = sbr.rel (%p228) target = $region16
      $region15: #{tpu_custom_call.1} parent=11 // pred_region
        _
      $region16: #{tpu_custom_call.1} parent=11 // pred_fallthru
        _
      // Predicated region
      $region17: #{tpu_custom_call.1} parent=11 // pred_check
        %p231 = pneg %p82
      $region18: #{tpu_custom_call.1} parent=11 // pred_check_branch
        %233 = sbr.rel (%p231) target = $region20
      $region19: #{tpu_custom_call.1} parent=11 // pred_region
        _
      $region20: #{tpu_custom_call.1} parent=11 // pred_fallthru
        _
      // Predicated region
      $region21: #{tpu_custom_call.1} parent=11 // pred_check
        %p234 = pneg %p103
      $region22: #{tpu_custom_call.1} parent=11 // pred_check_branch
        %236 = sbr.rel (%p234) target = $region24
      $region23: #{tpu_custom_call.1} parent=11 // pred_region
        _
      $region24: #{tpu_custom_call.1} parent=11 // pred_fallthru
        _
      // Predicated region
      $region25: #{tpu_custom_call.1} parent=11 // pred_check
        %p237 = pneg %p124
      $region26: #{tpu_custom_call.1} parent=11 // pred_check_branch
        %239 = sbr.rel (%p237) target = $region28
      $region27: #{tpu_custom_call.1} parent=11 // pred_region
        _
      $region28: #{tpu_custom_call.1} parent=11 // pred_fallthru
        _
      // Predicated region
      $region29: #{tpu_custom_call.1} parent=11 // pred_check
        %p240 = pneg %p145
      $region30: #{tpu_custom_call.1} parent=11 // pred_check_branch
        %242 = sbr.rel (%p240) target = $region32
      $region31: #{tpu_custom_call.1} parent=11 // pred_region
        _
      $region32: #{tpu_custom_call.1} parent=11 // pred_fallthru
        _
      // Predicated region
      $region33: #{tpu_custom_call.1} parent=11 // pred_check
        %p243 = pneg %p166
      $region34: #{tpu_custom_call.1} parent=11 // pred_check_branch
        %245 = sbr.rel (%p243) target = $region36
      $region35: #{tpu_custom_call.1} parent=11 // pred_region
        _
      $region36: #{tpu_custom_call.1} parent=11 // pred_fallthru
        _
      // Predicated region
      $region37: #{tpu_custom_call.1} parent=11 // pred_check
        %p246 = pneg %p187
      $region38: #{tpu_custom_call.1} parent=11 // pred_check_branch
        %248 = sbr.rel (%p246) target = $region40
      $region39: #{tpu_custom_call.1} parent=11 // pred_region
        _
      $region40: #{tpu_custom_call.1} parent=11 // pred_fallthru
        _
    $region12: #{tpu_custom_call.1} parent=5 // pred_fallthru
      _
    %p249 = scmp.lt.s32.totalorder %s14, 2
    // Predicated region
    $region41: #{tpu_custom_call.1} parent=5 // pred_check
      %p250 = pneg %p249
    $region42: #{tpu_custom_call.1} parent=5 // pred_check_branch
      %252 = sbr.rel (%p250) target = $region44
    $region43: #{tpu_custom_call.1} parent=5 // pred_region
      // Predicated region
      $region45: #{tpu_custom_call.1} parent=43 // pred_check
        %p253 = pneg %p34
      $region46: #{tpu_custom_call.1} parent=43 // pred_check_branch
        %255 = sbr.rel (%p253) target = $region48
      $region47: #{tpu_custom_call.1} parent=43 // pred_region
        %s256 = smul.u32 8, %s14
        %p257 = scmp.lt.s32.totalorder %s256, 15
        %s258 = scalar_select %p257, %s256, 15
        %s259 = smul.addr %s258, 8
        %s260 = scalar_lea.vmem %s0, %s259
        %s261 = smul.u32 8, %s14
      $region48: #{tpu_custom_call.1} parent=43 // pred_fallthru
        _
    $region44: #{tpu_custom_call.1} parent=5 // pred_fallthru
      _
    %p262 = scmp.le.s32.totalorder 1, %s14
    %p263 = scmp.lt.s32.totalorder %s14, 3
    %p264 = pnand %p262, %p263
    %p265 = pneg %p264
    // Predicated region
    $region49: #{tpu_custom_call.1} parent=5 // pred_check
      _
    $region50: #{tpu_custom_call.1} parent=5 // pred_check_branch
      %267 = sbr.rel (%p264) target = $region52
    $region51: #{tpu_custom_call.1} parent=5 // pred_region
      %s268 = ssub.s32 %s14, 1
      %s269 = smul.u32 8, %s19
      %p270 = scmp.lt.s32.totalorder %s269, 15
      %s271 = scalar_select %p270, %s269, 15
      %s272 = smul.addr %s271, 8
      %s273 = scalar_lea.vmem %s0, %s272
      %p274 = pneg %p40
      %p275 = pneg %p37
      %p276 = pneg %p61
      %p277 = pneg %p58
      %p278 = pneg %p82
      %p279 = pneg %p79
      %p280 = pneg %p103
      %p281 = pneg %p100
      %p282 = pneg %p124
      %p283 = pneg %p121
      %p284 = pneg %p145
      %p285 = pneg %p142
      %p286 = pneg %p166
      %p287 = pneg %p163
      %p288 = pneg %p187
      %p289 = pneg %p184
      %p290 = pneg %p213
      %p291 = pneg %p210
      %s292 = smul.u32 8, %s19
      %p293 = scmp.lt.s32.totalorder %s292, 15
      %s294 = scalar_select %p293, %s292, 15
      %s295 = smul.addr %s294, 8
      %s296 = scalar_lea.vmem %s8, %s295
      %s297 = smul.u32 8, %s19
      %p298 = scmp.lt.s32.totalorder %s297, 15
      %s299 = scalar_select %p298, %s297, 15
      %s300 = smul.addr %s299, 8
      %s301 = scalar_lea.vmem %s0, %s300
      %s302 = smul.u32 8, %s19
      %s303 = smul.u32 8, %s19
      %p304 = scmp.lt.s32.totalorder %s303, 15
      %s305 = scalar_select %p304, %s303, 15
      %s306 = smul.addr %s305, 8
      %s307 = scalar_lea.vmem %s8, %s306
      %s308 = smul.u32 8, %s19
      %v310 = vld [vmem:[%s301] sm:$0xff]
      %v311 = vld [vmem:[%s301 + $0x8] sm:$0xff]
      %v312 = vld [vmem:[%s301 + $0x10] sm:$0xff]
      %v313 = vld [vmem:[%s301 + $0x18] sm:$0xff]
      %v314 = vld [vmem:[%s301 + $0x20] sm:$0xff]
      %v315 = vld [vmem:[%s301 + $0x28] sm:$0xff]
      %v316 = vld [vmem:[%s301 + $0x30] sm:$0xff]
      %v317 = vld [vmem:[%s301 + $0x38] sm:$0xff]
      %vm318 = vcmask 261120
      %v319 = vsel %vm318, %v310, 0.0
      %v320 = vsel %vm318, %v311, 0.0
      %v321 = vadd.f32 %v319, %v320
      %v322 = vsel %vm318, %v312, 0.0
      %v323 = vadd.f32 %v321, %v322
      %v324 = vsel %vm318, %v313, 0.0
      %v325 = vadd.f32 %v323, %v324
      %v326 = vsel %vm318, %v314, 0.0
      %v327 = vadd.f32 %v325, %v326
      %v328 = vsel %vm318, %v315, 0.0
      %v329 = vadd.f32 %v327, %v328
      %v330 = vsel %vm318, %v316, 0.0
      %v331 = vadd.f32 %v329, %v330
      %v332 = vsel %vm318, %v317, 0.0
      %v333 = vadd.f32 %v331, %v332
      %v334 = vrot.slane %v333, 4
      %v335 = vadd.f32 %v333, %v334
      %v336 = vrot.slane %v335, 2
      %v337 = vadd.f32 %v335, %v336
      %v338 = vrot.slane %v337, 1
      %v339 = vadd.f32 %v337, %v338
      %v340 = vrcp.pop 64.0
      %v341 = vmul.f32 %v339, %v340
      %v342 = vld [vmem:[%s3] sm:$0xff]
      %v343 = vld [vmem:[%s3 + $0x8] sm:$0xff]
      %v344 = vld [vmem:[%s3 + $0x10] sm:$0xff]
      %v345 = vld [vmem:[%s3 + $0x18] sm:$0xff]
      %v346 = vld [vmem:[%s4] sm:$0xff]
      %v348 = vsel %vm318, %v341, 0
      %350 = vmatprep.subr.mxu0 0.0
      %351 = vmatpush1.msra.mxu0 %v342
      %352 = vmatprep.subr.mxu0 0.0
      %353 = vmatpush1.msra.mxu0 %v343
      %354 = vmatprep.subr.mxu0 0.0
      %355 = vmatpush1.msra.mxu0 %v344
      %356 = vmatprep.subr.mxu0 0.0
      %357 = vmatpush1.msra.mxu0 %v345
      %358 = vmatprep.subr.mxu0 0.0
      %359 = vmatpush1.msra.mxu0 0.0
      %360 = vmatprep.subr.mxu0 0.0
      %361 = vmatpush1.msra.mxu0 0.0
      %362 = vmatprep.subr.mxu0 0.0
      %363 = vmatpush1.msra.mxu0 0.0
      %364 = vmatprep.subr.mxu0 0.0
      %365 = vmatpush1.msra.mxu0 0.0
      %366 = vmatprep.subr.mxu0 0.0
      %367 = vmatpush1.msra.mxu0 0.0
      %368 = vmatprep.subr.mxu0 0.0
      %369 = vmatpush1.msra.mxu0 0.0
      %370 = vmatprep.subr.mxu0 0.0
      %371 = vmatpush1.msra.mxu0 0.0
      %372 = vmatprep.subr.mxu0 0.0
      %373 = vmatpush1.msra.mxu0 0.0
      %374 = vmatprep.subr.mxu0 0.0
      %375 = vmatpush1.msra.mxu0 0.0
      %376 = vmatprep.subr.mxu0 0.0
      %377 = vmatpush1.msra.mxu0 0.0
      %378 = vmatprep.subr.mxu0 0.0
      %379 = vmatpush1.msra.mxu0 0.0
      %380 = vmatprep.subr.mxu0 0.0
      %381 = vmatpush1.msra.mxu0 0.0
      %382 = vmatprep.subr.mxu0 0.0
      %383 = vmatpush1.msra.mxu0 0.0
      %384 = vmatprep.subr.mxu0 0.0
      %385 = vmatpush1.msra.mxu0 0.0
      %386 = vmatprep.subr.mxu0 0.0
      %387 = vmatpush1.msra.mxu0 0.0
      %388 = vmatprep.subr.mxu0 0.0
      %389 = vmatpush1.msra.mxu0 0.0
      %390 = vmatprep.subr.mxu0 0.0
      %391 = vmatpush1.msra.mxu0 0.0
      %392 = vmatprep.subr.mxu0 0.0
      %393 = vmatpush1.msra.mxu0 0.0
      %394 = vmatprep.subr.mxu0 0.0
      %395 = vmatpush1.msra.mxu0 0.0
      %396 = vmatprep.subr.mxu0 0.0
      %397 = vmatpush1.msra.mxu0 0.0
      %398 = vmatprep.subr.mxu0 0.0
      %399 = vmatpush1.msra.mxu0 0.0
      %400 = vmatprep.subr.mxu0 0.0
      %401 = vmatpush1.msra.mxu0 0.0
      %402 = vmatprep.subr.mxu0 0.0
      %403 = vmatpush1.msra.mxu0 0.0
      %404 = vmatprep.subr.mxu0 0.0
      %405 = vmatpush1.msra.mxu0 0.0
      %406 = vmatprep.subr.mxu0 0.0
      %407 = vmatpush1.msra.mxu0 0.0
      %408 = vmatprep.subr.mxu0 0.0
      %409 = vmatpush1.msra.mxu0 0.0
      %410 = vmatprep.subr.mxu0 0.0
      %411 = vmatpush1.msra.mxu0 0.0
      %412 = vmatprep.subr.mxu0 0.0
      %413 = vmatpush1.msra.mxu0 0.0
      %414 = vmatprep.mubr.f32.mxu0 0.0
      %415 = vmatmul.mubr.f32.gmra.mrb[0].mxu0 %v348
      %v416 = vpop.f32.mrb[0].mxu0
      %v417 = vadd.f32 0.0, %v416
      %v418 = vpop.f32.mrb[0].mxu0
      %419 = vdwg.mxu0
      %vm420 = vcmask 64512
      %v422 = vsel %vm420, %v417, 0
      %424 = vmatprep.subr.mxu0 0.0
      %425 = vmatpush1.msra.mxu0 %v346
      %426 = vmatprep.subr.mxu0 0.0
      %427 = vmatpush1.msra.mxu0 0.0
      %428 = vmatprep.subr.mxu0 0.0
      %429 = vmatpush1.msra.mxu0 0.0
      %430 = vmatprep.subr.mxu0 0.0
      %431 = vmatpush1.msra.mxu0 0.0
      %432 = vmatprep.subr.mxu0 0.0
      %433 = vmatpush1.msra.mxu0 0.0
      %434 = vmatprep.subr.mxu0 0.0
      %435 = vmatpush1.msra.mxu0 0.0
      %436 = vmatprep.subr.mxu0 0.0
      %437 = vmatpush1.msra.mxu0 0.0
      %438 = vmatprep.subr.mxu0 0.0
      %439 = vmatpush1.msra.mxu0 0.0
      %440 = vmatprep.subr.mxu0 0.0
      %441 = vmatpush1.msra.mxu0 0.0
      %442 = vmatprep.subr.mxu0 0.0
      %443 = vmatpush1.msra.mxu0 0.0
      %444 = vmatprep.subr.mxu0 0.0
      %445 = vmatpush1.msra.mxu0 0.0
      %446 = vmatprep.subr.mxu0 0.0
      %447 = vmatpush1.msra.mxu0 0.0
      %448 = vmatprep.subr.mxu0 0.0
      %449 = vmatpush1.msra.mxu0 0.0
      %450 = vmatprep.subr.mxu0 0.0
      %451 = vmatpush1.msra.mxu0 0.0
      %452 = vmatprep.subr.mxu0 0.0
      %453 = vmatpush1.msra.mxu0 0.0
      %454 = vmatprep.subr.mxu0 0.0
      %455 = vmatpush1.msra.mxu0 0.0
      %456 = vmatprep.subr.mxu0 0.0
      %457 = vmatpush1.msra.mxu0 0.0
      %458 = vmatprep.subr.mxu0 0.0
      %459 = vmatpush1.msra.mxu0 0.0
      %460 = vmatprep.subr.mxu0 0.0
      %461 = vmatpush1.msra.mxu0 0.0
      %462 = vmatprep.subr.mxu0 0.0
      %463 = vmatpush1.msra.mxu0 0.0
      %464 = vmatprep.subr.mxu0 0.0
      %465 = vmatpush1.msra.mxu0 0.0
      %466 = vmatprep.subr.mxu0 0.0
      %467 = vmatpush1.msra.mxu0 0.0
      %468 = vmatprep.subr.mxu0 0.0
      %469 = vmatpush1.msra.mxu0 0.0
      %470 = vmatprep.subr.mxu0 0.0
      %471 = vmatpush1.msra.mxu0 0.0
      %472 = vmatprep.subr.mxu0 0.0
      %473 = vmatpush1.msra.mxu0 0.0
      %474 = vmatprep.subr.mxu0 0.0
      %475 = vmatpush1.msra.mxu0 0.0
      %476 = vmatprep.subr.mxu0 0.0
      %477 = vmatpush1.msra.mxu0 0.0
      %478 = vmatprep.subr.mxu0 0.0
      %479 = vmatpush1.msra.mxu0 0.0
      %480 = vmatprep.subr.mxu0 0.0
      %481 = vmatpush1.msra.mxu0 0.0
      %482 = vmatprep.subr.mxu0 0.0
      %483 = vmatpush1.msra.mxu0 0.0
      %484 = vmatprep.subr.mxu0 0.0
      %485 = vmatpush1.msra.mxu0 0.0
      %486 = vmatprep.subr.mxu0 0.0
      %487 = vmatpush1.msra.mxu0 0.0
      %488 = vmatprep.mubr.f32.mxu0 0.0
      %489 = vmatmul.mubr.f32.gmra.mrb[0].mxu0 %v422
      %v490 = vpop.f32.mrb[0].mxu0
      %v491 = vadd.f32 0.0, %v490
      %v492 = vpop.f32.mrb[0].mxu0
      %493 = vdwg.mxu0
      %v494 = vlaneseq
      %v495 = vshrl.u32 %v494, 7
      %v496 = vsub.s32 0, %v495
      %v497 = vrot.slane %v491, %v496
      %v498 = vsub.f32 %v310, %v497
      %v499 = vsub.f32 %v311, %v497
      %v500 = vsub.f32 %v312, %v497
      %v501 = vsub.f32 %v313, %v497
      %v502 = vsub.f32 %v314, %v497
      %v503 = vsub.f32 %v315, %v497
      %v504 = vsub.f32 %v316, %v497
      %v505 = vsub.f32 %v317, %v497
      %v506 = vmul.f32 %v498, %v498
      %v507 = vmul.f32 %v499, %v499
      %v508 = vmul.f32 %v500, %v500
      %v509 = vmul.f32 %v501, %v501
      %v510 = vmul.f32 %v502, %v502
      %v511 = vmul.f32 %v503, %v503
      %v512 = vmul.f32 %v504, %v504
      %v513 = vmul.f32 %v505, %v505
      %v514 = vsel %vm318, %v506, 0.0
      %v515 = vsel %vm318, %v507, 0.0
      %v516 = vadd.f32 %v514, %v515
      %v517 = vsel %vm318, %v508, 0.0
      %v518 = vadd.f32 %v516, %v517
      %v519 = vsel %vm318, %v509, 0.0
      %v520 = vadd.f32 %v518, %v519
      %v521 = vsel %vm318, %v510, 0.0
      %v522 = vadd.f32 %v520, %v521
      %v523 = vsel %vm318, %v511, 0.0
      %v524 = vadd.f32 %v522, %v523
      %v525 = vsel %vm318, %v512, 0.0
      %v526 = vadd.f32 %v524, %v525
      %v527 = vsel %vm318, %v513, 0.0
      %v528 = vadd.f32 %v526, %v527
      %v529 = vrot.slane %v528, 4
      %v530 = vadd.f32 %v528, %v529
      %v531 = vrot.slane %v530, 2
      %v532 = vadd.f32 %v530, %v531
      %v533 = vrot.slane %v532, 1
      %v534 = vadd.f32 %v532, %v533
      %v535 = vmul.f32 %v534, %v340
      %v537 = vsel %vm318, %v535, 0
      %539 = vmatprep.subr.mxu0 0.0
      %540 = vmatpush1.msra.mxu0 %v342
      %541 = vmatprep.subr.mxu0 0.0
      %542 = vmatpush1.msra.mxu0 %v343
      %543 = vmatprep.subr.mxu0 0.0
      %544 = vmatpush1.msra.mxu0 %v344
      %545 = vmatprep.subr.mxu0 0.0
      %546 = vmatpush1.msra.mxu0 %v345
      %547 = vmatprep.subr.mxu0 0.0
      %548 = vmatpush1.msra.mxu0 0.0
      %549 = vmatprep.subr.mxu0 0.0
      %550 = vmatpush1.msra.mxu0 0.0
      %551 = vmatprep.subr.mxu0 0.0
      %552 = vmatpush1.msra.mxu0 0.0
      %553 = vmatprep.subr.mxu0 0.0
      %554 = vmatpush1.msra.mxu0 0.0
      %555 = vmatprep.subr.mxu0 0.0
      %556 = vmatpush1.msra.mxu0 0.0
      %557 = vmatprep.subr.mxu0 0.0
      %558 = vmatpush1.msra.mxu0 0.0
      %559 = vmatprep.subr.mxu0 0.0
      %560 = vmatpush1.msra.mxu0 0.0
      %561 = vmatprep.subr.mxu0 0.0
      %562 = vmatpush1.msra.mxu0 0.0
      %563 = vmatprep.subr.mxu0 0.0
      %564 = vmatpush1.msra.mxu0 0.0
      %565 = vmatprep.subr.mxu0 0.0
      %566 = vmatpush1.msra.mxu0 0.0
      %567 = vmatprep.subr.mxu0 0.0
      %568 = vmatpush1.msra.mxu0 0.0
      %569 = vmatprep.subr.mxu0 0.0
      %570 = vmatpush1.msra.mxu0 0.0
      %571 = vmatprep.subr.mxu0 0.0
      %572 = vmatpush1.msra.mxu0 0.0
      %573 = vmatprep.subr.mxu0 0.0
      %574 = vmatpush1.msra.mxu0 0.0
      %575 = vmatprep.subr.mxu0 0.0
      %576 = vmatpush1.msra.mxu0 0.0
      %577 = vmatprep.subr.mxu0 0.0
      %578 = vmatpush1.msra.mxu0 0.0
      %579 = vmatprep.subr.mxu0 0.0
      %580 = vmatpush1.msra.mxu0 0.0
      %581 = vmatprep.subr.mxu0 0.0
      %582 = vmatpush1.msra.mxu0 0.0
      %583 = vmatprep.subr.mxu0 0.0
      %584 = vmatpush1.msra.mxu0 0.0
      %585 = vmatprep.subr.mxu0 0.0
      %586 = vmatpush1.msra.mxu0 0.0
      %587 = vmatprep.subr.mxu0 0.0
      %588 = vmatpush1.msra.mxu0 0.0
      %589 = vmatprep.subr.mxu0 0.0
      %590 = vmatpush1.msra.mxu0 0.0
      %591 = vmatprep.subr.mxu0 0.0
      %592 = vmatpush1.msra.mxu0 0.0
      %593 = vmatprep.subr.mxu0 0.0
      %594 = vmatpush1.msra.mxu0 0.0
      %595 = vmatprep.subr.mxu0 0.0
      %596 = vmatpush1.msra.mxu0 0.0
      %597 = vmatprep.subr.mxu0 0.0
      %598 = vmatpush1.msra.mxu0 0.0
      %599 = vmatprep.subr.mxu0 0.0
      %600 = vmatpush1.msra.mxu0 0.0
      %601 = vmatprep.subr.mxu0 0.0
      %602 = vmatpush1.msra.mxu0 0.0
      %603 = vmatprep.mubr.f32.mxu0 0.0
      %604 = vmatmul.mubr.f32.gmra.mrb[0].mxu0 %v537
      %v605 = vpop.f32.mrb[0].mxu0
      %v606 = vadd.f32 0.0, %v605
      %v607 = vpop.f32.mrb[0].mxu0
      %608 = vdwg.mxu0
      %v610 = vsel %vm420, %v606, 0
      %612 = vmatprep.subr.mxu0 0.0
      %613 = vmatpush1.msra.mxu0 %v346
      %614 = vmatprep.subr.mxu0 0.0
      %615 = vmatpush1.msra.mxu0 0.0
      %616 = vmatprep.subr.mxu0 0.0
      %617 = vmatpush1.msra.mxu0 0.0
      %618 = vmatprep.subr.mxu0 0.0
      %619 = vmatpush1.msra.mxu0 0.0
      %620 = vmatprep.subr.mxu0 0.0
      %621 = vmatpush1.msra.mxu0 0.0
      %622 = vmatprep.subr.mxu0 0.0
      %623 = vmatpush1.msra.mxu0 0.0
      %624 = vmatprep.subr.mxu0 0.0
      %625 = vmatpush1.msra.mxu0 0.0
      %626 = vmatprep.subr.mxu0 0.0
      %627 = vmatpush1.msra.mxu0 0.0
      %628 = vmatprep.subr.mxu0 0.0
      %629 = vmatpush1.msra.mxu0 0.0
      %630 = vmatprep.subr.mxu0 0.0
      %631 = vmatpush1.msra.mxu0 0.0
      %632 = vmatprep.subr.mxu0 0.0
      %633 = vmatpush1.msra.mxu0 0.0
      %634 = vmatprep.subr.mxu0 0.0
      %635 = vmatpush1.msra.mxu0 0.0
      %636 = vmatprep.subr.mxu0 0.0
      %637 = vmatpush1.msra.mxu0 0.0
      %638 = vmatprep.subr.mxu0 0.0
      %639 = vmatpush1.msra.mxu0 0.0
      %640 = vmatprep.subr.mxu0 0.0
      %641 = vmatpush1.msra.mxu0 0.0
      %642 = vmatprep.subr.mxu0 0.0
      %643 = vmatpush1.msra.mxu0 0.0
      %644 = vmatprep.subr.mxu0 0.0
      %645 = vmatpush1.msra.mxu0 0.0
      %646 = vmatprep.subr.mxu0 0.0
      %647 = vmatpush1.msra.mxu0 0.0
      %648 = vmatprep.subr.mxu0 0.0
      %649 = vmatpush1.msra.mxu0 0.0
      %650 = vmatprep.subr.mxu0 0.0
      %651 = vmatpush1.msra.mxu0 0.0
      %652 = vmatprep.subr.mxu0 0.0
      %653 = vmatpush1.msra.mxu0 0.0
      %654 = vmatprep.subr.mxu0 0.0
      %655 = vmatpush1.msra.mxu0 0.0
      %656 = vmatprep.subr.mxu0 0.0
      %657 = vmatpush1.msra.mxu0 0.0
      %658 = vmatprep.subr.mxu0 0.0
      %659 = vmatpush1.msra.mxu0 0.0
      %660 = vmatprep.subr.mxu0 0.0
      %661 = vmatpush1.msra.mxu0 0.0
      %662 = vmatprep.subr.mxu0 0.0
      %663 = vmatpush1.msra.mxu0 0.0
      %664 = vmatprep.subr.mxu0 0.0
      %665 = vmatpush1.msra.mxu0 0.0
      %666 = vmatprep.subr.mxu0 0.0
      %667 = vmatpush1.msra.mxu0 0.0
      %668 = vmatprep.subr.mxu0 0.0
      %669 = vmatpush1.msra.mxu0 0.0
      %670 = vmatprep.subr.mxu0 0.0
      %671 = vmatpush1.msra.mxu0 0.0
      %672 = vmatprep.subr.mxu0 0.0
      %673 = vmatpush1.msra.mxu0 0.0
      %674 = vmatprep.subr.mxu0 0.0
      %675 = vmatpush1.msra.mxu0 0.0
      %676 = vmatprep.mubr.f32.mxu0 0.0
      %677 = vmatmul.mubr.f32.gmra.mrb[0].mxu0 %v610
      %v678 = vpop.f32.mrb[0].mxu0
      %v679 = vadd.f32 1e-05, %v678
      %v680 = vpop.f32.mrb[0].mxu0
      %681 = vdwg.mxu0
      %v682 = vrsqrt.pop %v679
      %v683 = vld [vmem:[%s1] sm:$0x1]
      %v684 = vmul.f32 %v682, %v683
      %v685 = vlaneseq
      %v686 = vshrl.u32 %v685, 7
      %v687 = vsub.s32 0, %v686
      %v688 = vrot.slane %v684, %v687
      %v689 = vmul.f32 %v498, %v688
      %v690 = vmul.f32 %v499, %v688
      %v691 = vmul.f32 %v500, %v688
      %v692 = vmul.f32 %v501, %v688
      %v693 = vmul.f32 %v502, %v688
      %v694 = vmul.f32 %v503, %v688
      %v695 = vmul.f32 %v504, %v688
      %v696 = vmul.f32 %v505, %v688
      %v697 = vld [vmem:[%s2] sm:$0x1]
      %v699 = vlaneseq
      %v700 = vshrl.u32 %v699, 7
      %v701 = vsub.s32 0, %v700
      %v702 = vrot.slane %v697, %v701
      %v704 = vadd.f32 %v689, %v702
      %v705 = vadd.f32 %v690, %v702
      %v706 = vadd.f32 %v691, %v702
      %v707 = vadd.f32 %v692, %v702
      %v708 = vadd.f32 %v693, %v702
      %v709 = vadd.f32 %v694, %v702
      %v710 = vadd.f32 %v695, %v702
      %v711 = vadd.f32 %v696, %v702
      %v712 = vpack.c.bf16 %v705, %v704
      %v713 = vpack.c.bf16 %v707, %v706
      %v714 = vpack.c.bf16 %v709, %v708
      %v715 = vpack.c.bf16 %v711, %v710
      %v716 = vld [vmem:[%s5] sm:$0xf]
      %v717 = vld [vmem:[%s5 + $0x4] sm:$0xf]
      %v718 = vld [vmem:[%s5 + $0x8] sm:$0xf]
      %v719 = vld [vmem:[%s5 + $0xc] sm:$0xf]
      %v724 = vunpack.c.l.b16 %v716
      %v725 = vunpack.c.l.b16 %v717
      %v726 = vunpack.c.l.b16 %v718
      %v727 = vunpack.c.l.b16 %v719
      %v728 = vpack.c.b16 %v725, %v724
      %v729 = vpack.c.b16 %v727, %v726
      %v733 = vsel %vm318, %v712, 0
      %v736 = vsel %vm318, %v713, 0
      %v739 = vsel %vm318, %v714, 0
      %v742 = vsel %vm318, %v715, 0
      %744 = vmatprep.subr.bf16.mxu0 0
      %745 = vmatpush1.bf16.msra.mxu0 %v728
      %746 = vmatprep.subr.bf16.mxu0 0
      %747 = vmatpush1.bf16.msra.mxu0 %v729
      %748 = vmatprep.subr.bf16.mxu0 0
      %749 = vmatpush1.bf16.msra.mxu0 0
      %750 = vmatprep.subr.bf16.mxu0 0
      %751 = vmatpush1.bf16.msra.mxu0 0
      %752 = vmatprep.subr.bf16.mxu0 0
      %753 = vmatpush1.bf16.msra.mxu0 0
      %754 = vmatprep.subr.bf16.mxu0 0
      %755 = vmatpush1.bf16.msra.mxu0 0
      %756 = vmatprep.subr.bf16.mxu0 0
      %757 = vmatpush1.bf16.msra.mxu0 0
      %758 = vmatprep.subr.bf16.mxu0 0
      %759 = vmatpush1.bf16.msra.mxu0 0
      %760 = vmatprep.subr.bf16.mxu0 0
      %761 = vmatpush1.bf16.msra.mxu0 0
      %762 = vmatprep.subr.bf16.mxu0 0
      %763 = vmatpush1.bf16.msra.mxu0 0
      %764 = vmatprep.subr.bf16.mxu0 0
      %765 = vmatpush1.bf16.msra.mxu0 0
      %766 = vmatprep.subr.bf16.mxu0 0
      %767 = vmatpush1.bf16.msra.mxu0 0
      %768 = vmatprep.subr.bf16.mxu0 0
      %769 = vmatpush1.bf16.msra.mxu0 0
      %770 = vmatprep.subr.bf16.mxu0 0
      %771 = vmatpush1.bf16.msra.mxu0 0
      %772 = vmatprep.subr.bf16.mxu0 0
      %773 = vmatpush1.bf16.msra.mxu0 0
      %774 = vmatprep.subr.bf16.mxu0 0
      %775 = vmatpush1.bf16.msra.mxu0 0
      %776 = vmatprep.mubr.bf16.mxu0 0
      %777 = vmatmul.mubr.bf16.gmra.mrb[0].mxu0 %v733
      %v778 = vpop.f32.mrb[0].mxu0
      %v779 = vadd.f32 0.0, %v778
      %v780 = vpop.f32.mrb[0].mxu0
      %v781 = vpop.f32.mrb[0].mxu0
      %v782 = vadd.f32 0.0, %v781
      %v783 = vpop.f32.mrb[0].mxu0
      %784 = vmatprep.mubr.bf16.mxu0 0
      %785 = vmatmul.mubr.bf16.gmra.mrb[0].mxu0 %v736
      %v786 = vpop.f32.mrb[0].mxu0
      %v787 = vadd.f32 0.0, %v786
      %v788 = vpop.f32.mrb[0].mxu0
      %v789 = vpop.f32.mrb[0].mxu0
      %v790 = vadd.f32 0.0, %v789
      %v791 = vpop.f32.mrb[0].mxu0
      %792 = vmatprep.mubr.bf16.mxu0 0
      %793 = vmatmul.mubr.bf16.gmra.mrb[0].mxu0 %v739
      %v794 = vpop.f32.mrb[0].mxu0
      %v795 = vadd.f32 0.0, %v794
      %v796 = vpop.f32.mrb[0].mxu0
      %v797 = vpop.f32.mrb[0].mxu0
      %v798 = vadd.f32 0.0, %v797
      %v799 = vpop.f32.mrb[0].mxu0
      %800 = vmatprep.mubr.bf16.mxu0 0
      %801 = vmatmul.mubr.bf16.gmra.mrb[0].mxu0 %v742
      %v802 = vpop.f32.mrb[0].mxu0
      %v803 = vadd.f32 0.0, %v802
      %v804 = vpop.f32.mrb[0].mxu0
      %v805 = vpop.f32.mrb[0].mxu0
      %v806 = vadd.f32 0.0, %v805
      %v807 = vpop.f32.mrb[0].mxu0
      %808 = vdwg.mxu0
      %v809 = vpack.c.bf16 %v782, %v779
      %v810 = vpack.c.bf16 %v790, %v787
      %v811 = vpack.c.bf16 %v798, %v795
      %v812 = vpack.c.bf16 %v806, %v803
      %817 = vrot.lane.b32.xlu0 %v809, 96
      %v818 = vpop.permute.xlu0 %817
      %819 = vrot.lane.b32.xlu0 %v810, 96
      %v820 = vpop.permute.xlu0 %819
      %821 = vrot.lane.b32.xlu0 %v811, 96
      %v822 = vpop.permute.xlu0 %821
      %823 = vrot.lane.b32.xlu0 %v812, 96
      %v824 = vpop.permute.xlu0 %823
      %vm825 = vcmask 130048
      %v827 = vsel %vm825, %v809, 0
      %v830 = vsel %vm825, %v810, 0
      %v833 = vsel %vm825, %v811, 0
      %v836 = vsel %vm825, %v812, 0
      %v839 = vsel %vm825, %v818, 0
      %v842 = vsel %vm825, %v820, 0
      %v845 = vsel %vm825, %v822, 0
      %v848 = vsel %vm825, %v824, 0
      %850 = vmatprep.subr.bf16.mxu0 0
      %851 = vmatpush1.bf16.xpose.msra.mxu0 %v839
      %852 = vmatprep.subr.bf16.mxu0 0
      %853 = vmatpush1.bf16.xpose.msra.mxu0 %v842
      %854 = vmatprep.subr.bf16.mxu0 0
      %855 = vmatpush1.bf16.xpose.msra.mxu0 %v845
      %856 = vmatprep.subr.bf16.mxu0 0
      %857 = vmatpush1.bf16.xpose.msra.mxu0 %v848
      %858 = vmatprep.subr.bf16.mxu0 0
      %859 = vmatpush1.bf16.xpose.msra.mxu0 0
      %860 = vmatprep.subr.bf16.mxu0 0
      %861 = vmatpush1.bf16.xpose.msra.mxu0 0
      %862 = vmatprep.subr.bf16.mxu0 0
      %863 = vmatpush1.bf16.xpose.msra.mxu0 0
      %864 = vmatprep.subr.bf16.mxu0 0
      %865 = vmatpush1.bf16.xpose.msra.mxu0 0
      %866 = vmatprep.subr.bf16.mxu0 0
      %867 = vmatpush1.bf16.xpose.msra.mxu0 0
      %868 = vmatprep.subr.bf16.mxu0 0
      %869 = vmatpush1.bf16.xpose.msra.mxu0 0
      %870 = vmatprep.subr.bf16.mxu0 0
      %871 = vmatpush1.bf16.xpose.msra.mxu0 0
      %872 = vmatprep.subr.bf16.mxu0 0
      %873 = vmatpush1.bf16.xpose.msra.mxu0 0
      %874 = vmatprep.subr.bf16.mxu0 0
      %875 = vmatpush1.bf16.xpose.msra.mxu0 0
      %876 = vmatprep.subr.bf16.mxu0 0
      %877 = vmatpush1.bf16.xpose.msra.mxu0 0
      %878 = vmatprep.subr.bf16.mxu0 0
      %879 = vmatpush1.bf16.xpose.msra.mxu0 0
      %880 = vmatprep.subr.bf16.mxu0 0
      %881 = vmatpush1.bf16.xpose.msra.mxu0 0
      %882 = vmatprep.mubr.bf16.mxu0 0
      %883 = vmatmul.mubr.bf16.gmra.mrb[0].mxu0 %v827
      %v884 = vpop.f32.mrb[0].mxu0
      %v885 = vadd.f32 0.0, %v884
      %v886 = vpop.f32.mrb[0].mxu0
      %v887 = vpop.f32.mrb[0].mxu0
      %v888 = vadd.f32 0.0, %v887
      %v889 = vpop.f32.mrb[0].mxu0
      %890 = vmatprep.mubr.bf16.mxu0 0
      %891 = vmatmul.mubr.bf16.gmra.mrb[0].mxu0 %v830
      %v892 = vpop.f32.mrb[0].mxu0
      %v893 = vadd.f32 0.0, %v892
      %v894 = vpop.f32.mrb[0].mxu0
      %v895 = vpop.f32.mrb[0].mxu0
      %v896 = vadd.f32 0.0, %v895
      %v897 = vpop.f32.mrb[0].mxu0
      %898 = vmatprep.mubr.bf16.mxu0 0
      %899 = vmatmul.mubr.bf16.gmra.mrb[0].mxu0 %v833
      %v900 = vpop.f32.mrb[0].mxu0
      %v901 = vadd.f32 0.0, %v900
      %v902 = vpop.f32.mrb[0].mxu0
      %v903 = vpop.f32.mrb[0].mxu0
      %v904 = vadd.f32 0.0, %v903
      %v905 = vpop.f32.mrb[0].mxu0
      %906 = vmatprep.mubr.bf16.mxu0 0
      %907 = vmatmul.mubr.bf16.gmra.mrb[0].mxu0 %v836
      %v908 = vpop.f32.mrb[0].mxu0
      %v909 = vadd.f32 0.0, %v908
      %v910 = vpop.f32.mrb[0].mxu0
      %v911 = vpop.f32.mrb[0].mxu0
      %v912 = vadd.f32 0.0, %v911
      %v913 = vpop.f32.mrb[0].mxu0
      %914 = vdwg.mxu0
      %vm915 = vcmask 523264
      %v916 = vsel %vm915, %v885, -inf
      %917 = vmax.xlane.f32.xlu0 %v916
      %v918 = vpop.xlane.xlu0 %917
      %v919 = vsel %vm915, %v888, -inf
      %920 = vmax.xlane.f32.xlu0 %v919
      %v921 = vpop.xlane.xlu0 %920
      %v922 = vsel %vm915, %v893, -inf
      %923 = vmax.xlane.f32.xlu0 %v922
      %v924 = vpop.xlane.xlu0 %923
      %v925 = vsel %vm915, %v896, -inf
      %926 = vmax.xlane.f32.xlu0 %v925
      %v927 = vpop.xlane.xlu0 %926
      %v928 = vsel %vm915, %v901, -inf
      %929 = vmax.xlane.f32.xlu0 %v928
      %v930 = vpop.xlane.xlu0 %929
      %v931 = vsel %vm915, %v904, -inf
      %932 = vmax.xlane.f32.xlu0 %v931
      %v933 = vpop.xlane.xlu0 %932
      %v934 = vsel %vm915, %v909, -inf
      %935 = vmax.xlane.f32.xlu0 %v934
      %v936 = vpop.xlane.xlu0 %935
      %v937 = vsel %vm915, %v912, -inf
      %938 = vmax.xlane.f32.xlu0 %v937
      %v939 = vpop.xlane.xlu0 %938
      %v940 = vsub.f32 -inf, %v918
      %v941 = vsub.f32 -inf, %v921
      %v942 = vsub.f32 -inf, %v924
      %v943 = vsub.f32 -inf, %v927
      %v944 = vsub.f32 -inf, %v930
      %v945 = vsub.f32 -inf, %v933
      %v946 = vsub.f32 -inf, %v936
      %v947 = vsub.f32 -inf, %v939
      %v948 = vmul.f32 %v940, 1.442695
      %v949 = vpow.pop %v948
      %v950 = vmul.f32 %v941, 1.442695
      %v951 = vpow.pop %v950
      %v952 = vmul.f32 %v942, 1.442695
      %v953 = vpow.pop %v952
      %v954 = vmul.f32 %v943, 1.442695
      %v955 = vpow.pop %v954
      %v956 = vmul.f32 %v944, 1.442695
      %v957 = vpow.pop %v956
      %v958 = vmul.f32 %v945, 1.442695
      %v959 = vpow.pop %v958
      %v960 = vmul.f32 %v946, 1.442695
      %v961 = vpow.pop %v960
      %v962 = vmul.f32 %v947, 1.442695
      %v963 = vpow.pop %v962
      %v964 = vsub.f32 %v885, %v918
      %v965 = vsub.f32 %v888, %v921
      %v966 = vsub.f32 %v893, %v924
      %v967 = vsub.f32 %v896, %v927
      %v968 = vsub.f32 %v901, %v930
      %v969 = vsub.f32 %v904, %v933
      %v970 = vsub.f32 %v909, %v936
      %v971 = vsub.f32 %v912, %v939
      %v972 = vmul.f32 %v964, 1.442695
      %v973 = vpow.pop %v972
      %v974 = vmul.f32 %v965, 1.442695
      %v975 = vpow.pop %v974
      %v976 = vmul.f32 %v966, 1.442695
      %v977 = vpow.pop %v976
      %v978 = vmul.f32 %v967, 1.442695
      %v979 = vpow.pop %v978
      %v980 = vmul.f32 %v968, 1.442695
      %v981 = vpow.pop %v980
      %v982 = vmul.f32 %v969, 1.442695
      %v983 = vpow.pop %v982
      %v984 = vmul.f32 %v970, 1.442695
      %v985 = vpow.pop %v984
      %v986 = vmul.f32 %v971, 1.442695
      %v987 = vpow.pop %v986
      %v988 = vmul.f32 %v949, 0.0
      %v989 = vmul.f32 %v951, 0.0
      %v990 = vmul.f32 %v953, 0.0
      %v991 = vmul.f32 %v955, 0.0
      %v992 = vmul.f32 %v957, 0.0
      %v993 = vmul.f32 %v959, 0.0
      %v994 = vmul.f32 %v961, 0.0
      %v995 = vmul.f32 %v963, 0.0
      %v996 = vsel %vm915, %v973, 0.0
      %997 = vadd.xlane.f32.xlu0 %v996
      %v998 = vpop.xlane.xlu0 %997
      %v999 = vsel %vm915, %v975, 0.0
      %1000 = vadd.xlane.f32.xlu0 %v999
      %v1001 = vpop.xlane.xlu0 %1000
      %v1002 = vsel %vm915, %v977, 0.0
      %1003 = vadd.xlane.f32.xlu0 %v1002
      %v1004 = vpop.xlane.xlu0 %1003
      %v1005 = vsel %vm915, %v979, 0.0
      %1006 = vadd.xlane.f32.xlu0 %v1005
      %v1007 = vpop.xlane.xlu0 %1006
      %v1008 = vsel %vm915, %v981, 0.0
      %1009 = vadd.xlane.f32.xlu0 %v1008
      %v1010 = vpop.xlane.xlu0 %1009
      %v1011 = vsel %vm915, %v983, 0.0
      %1012 = vadd.xlane.f32.xlu0 %v1011
      %v1013 = vpop.xlane.xlu0 %1012
      %v1014 = vsel %vm915, %v985, 0.0
      %1015 = vadd.xlane.f32.xlu0 %v1014
      %v1016 = vpop.xlane.xlu0 %1015
      %v1017 = vsel %vm915, %v987, 0.0
      %1018 = vadd.xlane.f32.xlu0 %v1017
      %v1019 = vpop.xlane.xlu0 %1018
      %v1020 = vadd.f32 %v988, %v998
      %v1021 = vadd.f32 %v989, %v1001
      %v1022 = vadd.f32 %v990, %v1004
      %v1023 = vadd.f32 %v991, %v1007
      %v1024 = vadd.f32 %v992, %v1010
      %v1025 = vadd.f32 %v993, %v1013
      %v1026 = vadd.f32 %v994, %v1016
      %v1027 = vadd.f32 %v995, %v1019
      %v1028 = vpack.c.bf16 %v975, %v973
      %v1029 = vpack.c.bf16 %v979, %v977
      %v1030 = vpack.c.bf16 %v983, %v981
      %v1031 = vpack.c.bf16 %v987, %v985
      %1032 = vrot.lane.b32.xlu0 %v809, 64
      %v1033 = vpop.permute.xlu0 %1032
      %1034 = vrot.lane.b32.xlu0 %v810, 64
      %v1035 = vpop.permute.xlu0 %1034
      %1036 = vrot.lane.b32.xlu0 %v811, 64
      %v1037 = vpop.permute.xlu0 %1036
      %1038 = vrot.lane.b32.xlu0 %v812, 64
      %v1039 = vpop.permute.xlu0 %1038
      %v1045 = vsel %vm915, %v1028, 0
      %v1048 = vsel %vm915, %v1029, 0
      %v1051 = vsel %vm915, %v1030, 0
      %v1054 = vsel %vm915, %v1031, 0
      %1056 = vmatprep.subr.bf16.mxu0 0
      %1057 = vmatpush1.bf16.msra.mxu0 %v1033
      %1058 = vmatprep.subr.bf16.mxu0 0
      %1059 = vmatpush1.bf16.msra.mxu0 %v1035
      %1060 = vmatprep.subr.bf16.mxu0 0
      %1061 = vmatpush1.bf16.msra.mxu0 %v1037
      %1062 = vmatprep.subr.bf16.mxu0 0
      %1063 = vmatpush1.bf16.msra.mxu0 %v1039
      %1064 = vmatprep.subr.bf16.mxu0 0
      %1065 = vmatpush1.bf16.msra.mxu0 0
      %1066 = vmatprep.subr.bf16.mxu0 0
      %1067 = vmatpush1.bf16.msra.mxu0 0
      %1068 = vmatprep.subr.bf16.mxu0 0
      %1069 = vmatpush1.bf16.msra.mxu0 0
      %1070 = vmatprep.subr.bf16.mxu0 0
      %1071 = vmatpush1.bf16.msra.mxu0 0
      %1072 = vmatprep.subr.bf16.mxu0 0
      %1073 = vmatpush1.bf16.msra.mxu0 0
      %1074 = vmatprep.subr.bf16.mxu0 0
      %1075 = vmatpush1.bf16.msra.mxu0 0
      %1076 = vmatprep.subr.bf16.mxu0 0
      %1077 = vmatpush1.bf16.msra.mxu0 0
      %1078 = vmatprep.subr.bf16.mxu0 0
      %1079 = vmatpush1.bf16.msra.mxu0 0
      %1080 = vmatprep.subr.bf16.mxu0 0
      %1081 = vmatpush1.bf16.msra.mxu0 0
      %1082 = vmatprep.subr.bf16.mxu0 0
      %1083 = vmatpush1.bf16.msra.mxu0 0
      %1084 = vmatprep.subr.bf16.mxu0 0
      %1085 = vmatpush1.bf16.msra.mxu0 0
      %1086 = vmatprep.subr.bf16.mxu0 0
      %1087 = vmatpush1.bf16.msra.mxu0 0
      %1088 = vmatprep.mubr.bf16.mxu0 0
      %1089 = vmatmul.mubr.bf16.gmra.mrb[0].mxu0 %v1045
      %v1090 = vpop.f32.mrb[0].mxu0
      %v1091 = vadd.f32 0.0, %v1090
      %v1092 = vpop.f32.mrb[0].mxu0
      %v1093 = vpop.f32.mrb[0].mxu0
      %v1094 = vadd.f32 0.0, %v1093
      %v1095 = vpop.f32.mrb[0].mxu0
      %1096 = vmatprep.mubr.bf16.mxu0 0
      %1097 = vmatmul.mubr.bf16.gmra.mrb[0].mxu0 %v1048
      %v1098 = vpop.f32.mrb[0].mxu0
      %v1099 = vadd.f32 0.0, %v1098
      %v1100 = vpop.f32.mrb[0].mxu0
      %v1101 = vpop.f32.mrb[0].mxu0
      %v1102 = vadd.f32 0.0, %v1101
      %v1103 = vpop.f32.mrb[0].mxu0
      %1104 = vmatprep.mubr.bf16.mxu0 0
      %1105 = vmatmul.mubr.bf16.gmra.mrb[0].mxu0 %v1051
      %v1106 = vpop.f32.mrb[0].mxu0
      %v1107 = vadd.f32 0.0, %v1106
      %v1108 = vpop.f32.mrb[0].mxu0
      %v1109 = vpop.f32.mrb[0].mxu0
      %v1110 = vadd.f32 0.0, %v1109
      %v1111 = vpop.f32.mrb[0].mxu0
      %1112 = vmatprep.mubr.bf16.mxu0 0
      %1113 = vmatmul.mubr.bf16.gmra.mrb[0].mxu0 %v1054
      %v1114 = vpop.f32.mrb[0].mxu0
      %v1115 = vadd.f32 0.0, %v1114
      %v1116 = vpop.f32.mrb[0].mxu0
      %v1117 = vpop.f32.mrb[0].mxu0
      %v1118 = vadd.f32 0.0, %v1117
      %v1119 = vpop.f32.mrb[0].mxu0
      %1120 = vdwg.mxu0
      %v1121 = vadd.f32 %v988, %v1091
      %v1122 = vadd.f32 %v989, %v1094
      %v1123 = vadd.f32 %v990, %v1099
      %v1124 = vadd.f32 %v991, %v1102
      %v1125 = vadd.f32 %v992, %v1107
      %v1126 = vadd.f32 %v993, %v1110
      %v1127 = vadd.f32 %v994, %v1115
      %v1128 = vadd.f32 %v995, %v1118
      %v1129 = vrcp.pop %v1020
      %v1130 = vrcp.pop %v1021
      %v1131 = vrcp.pop %v1022
      %v1132 = vrcp.pop %v1023
      %v1133 = vrcp.pop %v1024
      %v1134 = vrcp.pop %v1025
      %v1135 = vrcp.pop %v1026
      %v1136 = vrcp.pop %v1027
      %v1137 = vmul.f32 %v1121, %v1129
      %v1138 = vmul.f32 %v1122, %v1130
      %v1139 = vmul.f32 %v1123, %v1131
      %v1140 = vmul.f32 %v1124, %v1132
      %v1141 = vmul.f32 %v1125, %v1133
      %v1142 = vmul.f32 %v1126, %v1134
      %v1143 = vmul.f32 %v1127, %v1135
      %v1144 = vmul.f32 %v1128, %v1136
      %1145 = vrot.lane.b32.xlu0 %v809, 112
      %v1146 = vpop.permute.xlu0 %1145
      %1147 = vrot.lane.b32.xlu0 %v810, 112
      %v1148 = vpop.permute.xlu0 %1147
      %1149 = vrot.lane.b32.xlu0 %v811, 112
      %v1150 = vpop.permute.xlu0 %1149
      %1151 = vrot.lane.b32.xlu0 %v812, 112
      %v1152 = vpop.permute.xlu0 %1151
      %1153 = vrot.lane.b32.xlu0 %v809, 80
      %v1154 = vpop.permute.xlu0 %1153
      %1155 = vrot.lane.b32.xlu0 %v810, 80
      %v1156 = vpop.permute.xlu0 %1155
      %1157 = vrot.lane.b32.xlu0 %v811, 80
      %v1158 = vpop.permute.xlu0 %1157
      %1159 = vrot.lane.b32.xlu0 %v812, 80
      %v1160 = vpop.permute.xlu0 %1159
      %v1162 = vsel %vm825, %v1146, 0
      %v1165 = vsel %vm825, %v1148, 0
      %v1168 = vsel %vm825, %v1150, 0
      %v1171 = vsel %vm825, %v1152, 0
      %v1174 = vsel %vm825, %v1154, 0
      %v1177 = vsel %vm825, %v1156, 0
      %v1180 = vsel %vm825, %v1158, 0
      %v1183 = vsel %vm825, %v1160, 0
      %1185 = vmatprep.subr.bf16.mxu0 0
      %1186 = vmatpush1.bf16.xpose.msra.mxu0 %v1174
      %1187 = vmatprep.subr.bf16.mxu0 0
      %1188 = vmatpush1.bf16.xpose.msra.mxu0 %v1177
      %1189 = vmatprep.subr.bf16.mxu0 0
      %1190 = vmatpush1.bf16.xpose.msra.mxu0 %v1180
      %1191 = vmatprep.subr.bf16.mxu0 0
      %1192 = vmatpush1.bf16.xpose.msra.mxu0 %v1183
      %1193 = vmatprep.subr.bf16.mxu0 0
      %1194 = vmatpush1.bf16.xpose.msra.mxu0 0
      %1195 = vmatprep.subr.bf16.mxu0 0
      %1196 = vmatpush1.bf16.xpose.msra.mxu0 0
      %1197 = vmatprep.subr.bf16.mxu0 0
      %1198 = vmatpush1.bf16.xpose.msra.mxu0 0
      %1199 = vmatprep.subr.bf16.mxu0 0
      %1200 = vmatpush1.bf16.xpose.msra.mxu0 0
      %1201 = vmatprep.subr.bf16.mxu0 0
      %1202 = vmatpush1.bf16.xpose.msra.mxu0 0
      %1203 = vmatprep.subr.bf16.mxu0 0
      %1204 = vmatpush1.bf16.xpose.msra.mxu0 0
      %1205 = vmatprep.subr.bf16.mxu0 0
      %1206 = vmatpush1.bf16.xpose.msra.mxu0 0
      %1207 = vmatprep.subr.bf16.mxu0 0
      %1208 = vmatpush1.bf16.xpose.msra.mxu0 0
      %1209 = vmatprep.subr.bf16.mxu0 0
      %1210 = vmatpush1.bf16.xpose.msra.mxu0 0
      %1211 = vmatprep.subr.bf16.mxu0 0
      %1212 = vmatpush1.bf16.xpose.msra.mxu0 0
      %1213 = vmatprep.subr.bf16.mxu0 0
      %1214 = vmatpush1.bf16.xpose.msra.mxu0 0
      %1215 = vmatprep.subr.bf16.mxu0 0
      %1216 = vmatpush1.bf16.xpose.msra.mxu0 0
      %1217 = vmatprep.mubr.bf16.mxu0 0
      %1218 = vmatmul.mubr.bf16.gmra.mrb[0].mxu0 %v1162
      %v1219 = vpop.f32.mrb[0].mxu0
      %v1220 = vadd.f32 0.0, %v1219
      %v1221 = vpop.f32.mrb[0].mxu0
      %v1222 = vpop.f32.mrb[0].mxu0
      %v1223 = vadd.f32 0.0, %v1222
      %v1224 = vpop.f32.mrb[0].mxu0
      %1225 = vmatprep.mubr.bf16.mxu0 0
      %1226 = vmatmul.mubr.bf16.gmra.mrb[0].mxu0 %v1165
      %v1227 = vpop.f32.mrb[0].mxu0
      %v1228 = vadd.f32 0.0, %v1227
      %v1229 = vpop.f32.mrb[0].mxu0
      %v1230 = vpop.f32.mrb[0].mxu0
      %v1231 = vadd.f32 0.0, %v1230
      %v1232 = vpop.f32.mrb[0].mxu0
      %1233 = vmatprep.mubr.bf16.mxu0 0
      %1234 = vmatmul.mubr.bf16.gmra.mrb[0].mxu0 %v1168
      %v1235 = vpop.f32.mrb[0].mxu0
      %v1236 = vadd.f32 0.0, %v1235
      %v1237 = vpop.f32.mrb[0].mxu0
      %v1238 = vpop.f32.mrb[0].mxu0
      %v1239 = vadd.f32 0.0, %v1238
      %v1240 = vpop.f32.mrb[0].mxu0
      %1241 = vmatprep.mubr.bf16.mxu0 0
      %1242 = vmatmul.mubr.bf16.gmra.mrb[0].mxu0 %v1171
      %v1243 = vpop.f32.mrb[0].mxu0
      %v1244 = vadd.f32 0.0, %v1243
      %v1245 = vpop.f32.mrb[0].mxu0
      %v1246 = vpop.f32.mrb[0].mxu0
      %v1247 = vadd.f32 0.0, %v1246
      %v1248 = vpop.f32.mrb[0].mxu0
      %1249 = vdwg.mxu0
      %v1250 = vsel %vm915, %v1220, -inf
      %1251 = vmax.xlane.f32.xlu0 %v1250
      %v1252 = vpop.xlane.xlu0 %1251
      %v1253 = vsel %vm915, %v1223, -inf
      %1254 = vmax.xlane.f32.xlu0 %v1253
      %v1255 = vpop.xlane.xlu0 %1254
      %v1256 = vsel %vm915, %v1228, -inf
      %1257 = vmax.xlane.f32.xlu0 %v1256
      %v1258 = vpop.xlane.xlu0 %1257
      %v1259 = vsel %vm915, %v1231, -inf
      %1260 = vmax.xlane.f32.xlu0 %v1259
      %v1261 = vpop.xlane.xlu0 %1260
      %v1262 = vsel %vm915, %v1236, -inf
      %1263 = vmax.xlane.f32.xlu0 %v1262
      %v1264 = vpop.xlane.xlu0 %1263
      %v1265 = vsel %vm915, %v1239, -inf
      %1266 = vmax.xlane.f32.xlu0 %v1265
      %v1267 = vpop.xlane.xlu0 %1266
      %v1268 = vsel %vm915, %v1244, -inf
      %1269 = vmax.xlane.f32.xlu0 %v1268
      %v1270 = vpop.xlane.xlu0 %1269
      %v1271 = vsel %vm915, %v1247, -inf
      %1272 = vmax.xlane.f32.xlu0 %v1271
      %v1273 = vpop.xlane.xlu0 %1272
      %v1274 = vsub.f32 -inf, %v1252
      %v1275 = vsub.f32 -inf, %v1255
      %v1276 = vsub.f32 -inf, %v1258
      %v1277 = vsub.f32 -inf, %v1261
      %v1278 = vsub.f32 -inf, %v1264
      %v1279 = vsub.f32 -inf, %v1267
      %v1280 = vsub.f32 -inf, %v1270
      %v1281 = vsub.f32 -inf, %v1273
      %v1282 = vmul.f32 %v1274, 1.442695
      %v1283 = vpow.pop %v1282
      %v1284 = vmul.f32 %v1275, 1.442695
      %v1285 = vpow.pop %v1284
      %v1286 = vmul.f32 %v1276, 1.442695
      %v1287 = vpow.pop %v1286
      %v1288 = vmul.f32 %v1277, 1.442695
      %v1289 = vpow.pop %v1288
      %v1290 = vmul.f32 %v1278, 1.442695
      %v1291 = vpow.pop %v1290
      %v1292 = vmul.f32 %v1279, 1.442695
      %v1293 = vpow.pop %v1292
      %v1294 = vmul.f32 %v1280, 1.442695
      %v1295 = vpow.pop %v1294
      %v1296 = vmul.f32 %v1281, 1.442695
      %v1297 = vpow.pop %v1296
      %v1298 = vsub.f32 %v1220, %v1252
      %v1299 = vsub.f32 %v1223, %v1255
      %v1300 = vsub.f32 %v1228, %v1258
      %v1301 = vsub.f32 %v1231, %v1261
      %v1302 = vsub.f32 %v1236, %v1264
      %v1303 = vsub.f32 %v1239, %v1267
      %v1304 = vsub.f32 %v1244, %v1270
      %v1305 = vsub.f32 %v1247, %v1273
      %v1306 = vmul.f32 %v1298, 1.442695
      %v1307 = vpow.pop %v1306
      %v1308 = vmul.f32 %v1299, 1.442695
      %v1309 = vpow.pop %v1308
      %v1310 = vmul.f32 %v1300, 1.442695
      %v1311 = vpow.pop %v1310
      %v1312 = vmul.f32 %v1301, 1.442695
      %v1313 = vpow.pop %v1312
      %v1314 = vmul.f32 %v1302, 1.442695
      %v1315 = vpow.pop %v1314
      %v1316 = vmul.f32 %v1303, 1.442695
      %v1317 = vpow.pop %v1316
      %v1318 = vmul.f32 %v1304, 1.442695
      %v1319 = vpow.pop %v1318
      %v1320 = vmul.f32 %v1305, 1.442695
      %v1321 = vpow.pop %v1320
      %v1322 = vmul.f32 %v1283, 0.0
      %v1323 = vmul.f32 %v1285, 0.0
      %v1324 = vmul.f32 %v1287, 0.0
      %v1325 = vmul.f32 %v1289, 0.0
      %v1326 = vmul.f32 %v1291, 0.0
      %v1327 = vmul.f32 %v1293, 0.0
      %v1328 = vmul.f32 %v1295, 0.0
      %v1329 = vmul.f32 %v1297, 0.0
      %v1330 = vsel %vm915, %v1307, 0.0
      %1331 = vadd.xlane.f32.xlu0 %v1330
      %v1332 = vpop.xlane.xlu0 %1331
      %v1333 = vsel %vm915, %v1309, 0.0
      %1334 = vadd.xlane.f32.xlu0 %v1333
      %v1335 = vpop.xlane.xlu0 %1334
      %v1336 = vsel %vm915, %v1311, 0.0
      %1337 = vadd.xlane.f32.xlu0 %v1336
      %v1338 = vpop.xlane.xlu0 %1337
      %v1339 = vsel %vm915, %v1313, 0.0
      %1340 = vadd.xlane.f32.xlu0 %v1339
      %v1341 = vpop.xlane.xlu0 %1340
      %v1342 = vsel %vm915, %v1315, 0.0
      %1343 = vadd.xlane.f32.xlu0 %v1342
      %v1344 = vpop.xlane.xlu0 %1343
      %v1345 = vsel %vm915, %v1317, 0.0
      %1346 = vadd.xlane.f32.xlu0 %v1345
      %v1347 = vpop.xlane.xlu0 %1346
      %v1348 = vsel %vm915, %v1319, 0.0
      %1349 = vadd.xlane.f32.xlu0 %v1348
      %v1350 = vpop.xlane.xlu0 %1349
      %v1351 = vsel %vm915, %v1321, 0.0
      %1352 = vadd.xlane.f32.xlu0 %v1351
      %v1353 = vpop.xlane.xlu0 %1352
      %v1354 = vadd.f32 %v1322, %v1332
      %v1355 = vadd.f32 %v1323, %v1335
      %v1356 = vadd.f32 %v1324, %v1338
      %v1357 = vadd.f32 %v1325, %v1341
      %v1358 = vadd.f32 %v1326, %v1344
      %v1359 = vadd.f32 %v1327, %v1347
      %v1360 = vadd.f32 %v1328, %v1350
      %v1361 = vadd.f32 %v1329, %v1353
      %v1362 = vpack.c.bf16 %v1309, %v1307
      %v1363 = vpack.c.bf16 %v1313, %v1311
      %v1364 = vpack.c.bf16 %v1317, %v1315
      %v1365 = vpack.c.bf16 %v1321, %v1319
      %1366 = vrot.lane.b32.xlu0 %v809, 48
      %v1367 = vpop.permute.xlu0 %1366
      %1368 = vrot.lane.b32.xlu0 %v810, 48
      %v1369 = vpop.permute.xlu0 %1368
      %1370 = vrot.lane.b32.xlu0 %v811, 48
      %v1371 = vpop.permute.xlu0 %1370
      %1372 = vrot.lane.b32.xlu0 %v812, 48
      %v1373 = vpop.permute.xlu0 %1372
      %v1379 = vsel %vm915, %v1362, 0
      %v1382 = vsel %vm915, %v1363, 0
      %v1385 = vsel %vm915, %v1364, 0
      %v1388 = vsel %vm915, %v1365, 0
      %1390 = vmatprep.subr.bf16.mxu0 0
      %1391 = vmatpush1.bf16.msra.mxu0 %v1367
      %1392 = vmatprep.subr.bf16.mxu0 0
      %1393 = vmatpush1.bf16.msra.mxu0 %v1369
      %1394 = vmatprep.subr.bf16.mxu0 0
      %1395 = vmatpush1.bf16.msra.mxu0 %v1371
      %1396 = vmatprep.subr.bf16.mxu0 0
      %1397 = vmatpush1.bf16.msra.mxu0 %v1373
      %1398 = vmatprep.subr.bf16.mxu0 0
      %1399 = vmatpush1.bf16.msra.mxu0 0
      %1400 = vmatprep.subr.bf16.mxu0 0
      %1401 = vmatpush1.bf16.msra.mxu0 0
      %1402 = vmatprep.subr.bf16.mxu0 0
      %1403 = vmatpush1.bf16.msra.mxu0 0
      %1404 = vmatprep.subr.bf16.mxu0 0
      %1405 = vmatpush1.bf16.msra.mxu0 0
      %1406 = vmatprep.subr.bf16.mxu0 0
      %1407 = vmatpush1.bf16.msra.mxu0 0
      %1408 = vmatprep.subr.bf16.mxu0 0
      %1409 = vmatpush1.bf16.msra.mxu0 0
      %1410 = vmatprep.subr.bf16.mxu0 0
      %1411 = vmatpush1.bf16.msra.mxu0 0
      %1412 = vmatprep.subr.bf16.mxu0 0
      %1413 = vmatpush1.bf16.msra.mxu0 0
      %1414 = vmatprep.subr.bf16.mxu0 0
      %1415 = vmatpush1.bf16.msra.mxu0 0
      %1416 = vmatprep.subr.bf16.mxu0 0
      %1417 = vmatpush1.bf16.msra.mxu0 0
      %1418 = vmatprep.subr.bf16.mxu0 0
      %1419 = vmatpush1.bf16.msra.mxu0 0
      %1420 = vmatprep.subr.bf16.mxu0 0
      %1421 = vmatpush1.bf16.msra.mxu0 0
      %1422 = vmatprep.mubr.bf16.mxu0 0
      %1423 = vmatmul.mubr.bf16.gmra.mrb[0].mxu0 %v1379
      %v1424 = vpop.f32.mrb[0].mxu0
      %v1425 = vadd.f32 0.0, %v1424
      %v1426 = vpop.f32.mrb[0].mxu0
      %v1427 = vpop.f32.mrb[0].mxu0
      %v1428 = vadd.f32 0.0, %v1427
      %v1429 = vpop.f32.mrb[0].mxu0
      %1430 = vmatprep.mubr.bf16.mxu0 0
      %1431 = vmatmul.mubr.bf16.gmra.mrb[0].mxu0 %v1382
      %v1432 = vpop.f32.mrb[0].mxu0
      %v1433 = vadd.f32 0.0, %v1432
      %v1434 = vpop.f32.mrb[0].mxu0
      %v1435 = vpop.f32.mrb[0].mxu0
      %v1436 = vadd.f32 0.0, %v1435
      %v1437 = vpop.f32.mrb[0].mxu0
      %1438 = vmatprep.mubr.bf16.mxu0 0
      %1439 = vmatmul.mubr.bf16.gmra.mrb[0].mxu0 %v1385
      %v1440 = vpop.f32.mrb[0].mxu0
      %v1441 = vadd.f32 0.0, %v1440
      %v1442 = vpop.f32.mrb[0].mxu0
      %v1443 = vpop.f32.mrb[0].mxu0
      %v1444 = vadd.f32 0.0, %v1443
      %v1445 = vpop.f32.mrb[0].mxu0
      %1446 = vmatprep.mubr.bf16.mxu0 0
      %1447 = vmatmul.mubr.bf16.gmra.mrb[0].mxu0 %v1388
      %v1448 = vpop.f32.mrb[0].mxu0
      %v1449 = vadd.f32 0.0, %v1448
      %v1450 = vpop.f32.mrb[0].mxu0
      %v1451 = vpop.f32.mrb[0].mxu0
      %v1452 = vadd.f32 0.0, %v1451
      %v1453 = vpop.f32.mrb[0].mxu0
      %1454 = vdwg.mxu0
      %v1455 = vadd.f32 %v1322, %v1425
      %v1456 = vadd.f32 %v1323, %v1428
      %v1457 = vadd.f32 %v1324, %v1433
      %v1458 = vadd.f32 %v1325, %v1436
      %v1459 = vadd.f32 %v1326, %v1441
      %v1460 = vadd.f32 %v1327, %v1444
      %v1461 = vadd.f32 %v1328, %v1449
      %v1462 = vadd.f32 %v1329, %v1452
      %v1463 = vrcp.pop %v1354
      %v1464 = vrcp.pop %v1355
      %v1465 = vrcp.pop %v1356
      %v1466 = vrcp.pop %v1357
      %v1467 = vrcp.pop %v1358
      %v1468 = vrcp.pop %v1359
      %v1469 = vrcp.pop %v1360
      %v1470 = vrcp.pop %v1361
      %v1471 = vmul.f32 %v1455, %v1463
      %v1472 = vmul.f32 %v1456, %v1464
      %v1473 = vmul.f32 %v1457, %v1465
      %v1474 = vmul.f32 %v1458, %v1466
      %v1475 = vmul.f32 %v1459, %v1467
      %v1476 = vmul.f32 %v1460, %v1468
      %v1477 = vmul.f32 %v1461, %v1469
      %v1478 = vmul.f32 %v1462, %v1470
      %1487 = vrot.lane.b32.xlu0 %v1471, 16
      %v1488 = vpop.permute.xlu0 %1487
      %1489 = vrot.lane.b32.xlu0 %v1472, 16
      %v1490 = vpop.permute.xlu0 %1489
      %1491 = vrot.lane.b32.xlu0 %v1473, 16
      %v1492 = vpop.permute.xlu0 %1491
      %1493 = vrot.lane.b32.xlu0 %v1474, 16
      %v1494 = vpop.permute.xlu0 %1493
      %1495 = vrot.lane.b32.xlu0 %v1475, 16
      %v1496 = vpop.permute.xlu0 %1495
      %1497 = vrot.lane.b32.xlu0 %v1476, 16
      %v1498 = vpop.permute.xlu0 %1497
      %1499 = vrot.lane.b32.xlu0 %v1477, 16
      %v1500 = vpop.permute.xlu0 %1499
      %1501 = vrot.lane.b32.xlu0 %v1478, 16
      %v1502 = vpop.permute.xlu0 %1501
      %v1511 = vsel %vm825, %v1137, %v1488
      %v1512 = vsel %vm825, %v1138, %v1490
      %v1513 = vsel %vm825, %v1139, %v1492
      %v1514 = vsel %vm825, %v1140, %v1494
      %v1515 = vsel %vm825, %v1141, %v1496
      %v1516 = vsel %vm825, %v1142, %v1498
      %v1517 = vsel %vm825, %v1143, %v1500
      %v1518 = vsel %vm825, %v1144, %v1502
      %v1519 = vpack.c.bf16 %v1512, %v1511
      %v1520 = vpack.c.bf16 %v1514, %v1513
      %v1521 = vpack.c.bf16 %v1516, %v1515
      %v1522 = vpack.c.bf16 %v1518, %v1517
      %v1523 = vld [vmem:[%s6] sm:$0xf]
      %v1524 = vld [vmem:[%s6 + $0x4] sm:$0xf]
      %v1525 = vld [vmem:[%s6 + $0x8] sm:$0xf]
      %v1526 = vld [vmem:[%s6 + $0xc] sm:$0xf]
      %v1527 = vld [vmem:[%s7] sm:$0x1]
      %v1529 = vlaneseq
      %v1530 = vshrl.u32 %v1529, 7
      %v1531 = vsub.s32 0, %v1530
      %v1532 = vrot.slane %v1527, %v1531
      %v1538 = vunpack.c.l.b16 %v1523
      %v1539 = vunpack.c.l.b16 %v1524
      %v1540 = vunpack.c.l.b16 %v1525
      %v1541 = vunpack.c.l.b16 %v1526
      %v1542 = vpack.c.b16 %v1539, %v1538
      %v1543 = vpack.c.b16 %v1541, %v1540
      %v1547 = vsel %vm318, %v1519, 0
      %v1550 = vsel %vm318, %v1520, 0
      %v1553 = vsel %vm318, %v1521, 0
      %v1556 = vsel %vm318, %v1522, 0
      %1558 = vmatprep.subr.bf16.mxu0 0
      %1559 = vmatpush1.bf16.msra.mxu0 %v1542
      %1560 = vmatprep.subr.bf16.mxu0 0
      %1561 = vmatpush1.bf16.msra.mxu0 %v1543
      %1562 = vmatprep.subr.bf16.mxu0 0
      %1563 = vmatpush1.bf16.msra.mxu0 0
      %1564 = vmatprep.subr.bf16.mxu0 0
      %1565 = vmatpush1.bf16.msra.mxu0 0
      %1566 = vmatprep.subr.bf16.mxu0 0
      %1567 = vmatpush1.bf16.msra.mxu0 0
      %1568 = vmatprep.subr.bf16.mxu0 0
      %1569 = vmatpush1.bf16.msra.mxu0 0
      %1570 = vmatprep.subr.bf16.mxu0 0
      %1571 = vmatpush1.bf16.msra.mxu0 0
      %1572 = vmatprep.subr.bf16.mxu0 0
      %1573 = vmatpush1.bf16.msra.mxu0 0
      %1574 = vmatprep.subr.bf16.mxu0 0
      %1575 = vmatpush1.bf16.msra.mxu0 0
      %1576 = vmatprep.subr.bf16.mxu0 0
      %1577 = vmatpush1.bf16.msra.mxu0 0
      %1578 = vmatprep.subr.bf16.mxu0 0
      %1579 = vmatpush1.bf16.msra.mxu0 0
      %1580 = vmatprep.subr.bf16.mxu0 0
      %1581 = vmatpush1.bf16.msra.mxu0 0
      %1582 = vmatprep.subr.bf16.mxu0 0
      %1583 = vmatpush1.bf16.msra.mxu0 0
      %1584 = vmatprep.subr.bf16.mxu0 0
      %1585 = vmatpush1.bf16.msra.mxu0 0
      %1586 = vmatprep.subr.bf16.mxu0 0
      %1587 = vmatpush1.bf16.msra.mxu0 0
      %1588 = vmatprep.subr.bf16.mxu0 0
      %1589 = vmatpush1.bf16.msra.mxu0 0
      %1590 = vmatprep.mubr.bf16.mxu0 0
      %1591 = vmatmul.mubr.bf16.gmra.mrb[0].mxu0 %v1547
      %v1592 = vpop.f32.mrb[0].mxu0
      %v1593 = vadd.f32 %v1532, %v1592
      %v1594 = vpop.f32.mrb[0].mxu0
      %v1595 = vpop.f32.mrb[0].mxu0
      %v1596 = vadd.f32 %v1532, %v1595
      %v1597 = vpop.f32.mrb[0].mxu0
      %1598 = vmatprep.mubr.bf16.mxu0 0
      %1599 = vmatmul.mubr.bf16.gmra.mrb[0].mxu0 %v1550
      %v1600 = vpop.f32.mrb[0].mxu0
      %v1601 = vadd.f32 %v1532, %v1600
      %v1602 = vpop.f32.mrb[0].mxu0
      %v1603 = vpop.f32.mrb[0].mxu0
      %v1604 = vadd.f32 %v1532, %v1603
      %v1605 = vpop.f32.mrb[0].mxu0
      %1606 = vmatprep.mubr.bf16.mxu0 0
      %1607 = vmatmul.mubr.bf16.gmra.mrb[0].mxu0 %v1553
      %v1608 = vpop.f32.mrb[0].mxu0
      %v1609 = vadd.f32 %v1532, %v1608
      %v1610 = vpop.f32.mrb[0].mxu0
      %v1611 = vpop.f32.mrb[0].mxu0
      %v1612 = vadd.f32 %v1532, %v1611
      %v1613 = vpop.f32.mrb[0].mxu0
      %1614 = vmatprep.mubr.bf16.mxu0 0
      %1615 = vmatmul.mubr.bf16.gmra.mrb[0].mxu0 %v1556
      %v1616 = vpop.f32.mrb[0].mxu0
      %v1617 = vadd.f32 %v1532, %v1616
      %v1618 = vpop.f32.mrb[0].mxu0
      %v1619 = vpop.f32.mrb[0].mxu0
      %v1620 = vadd.f32 %v1532, %v1619
      %v1621 = vpop.f32.mrb[0].mxu0
      %1622 = vdwg.mxu0
      %v1623 = vadd.f32 %v1593, %v310
      %v1624 = vadd.f32 %v1596, %v311
      %v1625 = vadd.f32 %v1601, %v312
      %v1626 = vadd.f32 %v1604, %v313
      %v1627 = vadd.f32 %v1609, %v314
      %v1628 = vadd.f32 %v1612, %v315
      %v1629 = vadd.f32 %v1617, %v316
      %v1630 = vadd.f32 %v1620, %v317
      %1631 = vst.msk [vmem:[%s307] sm:$0xff] %vm318, %v1623
      %1632 = vst.msk [vmem:[%s307 + $0x8] sm:$0xff] %vm318, %v1624
      %1633 = vst.msk [vmem:[%s307 + $0x10] sm:$0xff] %vm318, %v1625
      %1634 = vst.msk [vmem:[%s307 + $0x18] sm:$0xff] %vm318, %v1626
      %1635 = vst.msk [vmem:[%s307 + $0x20] sm:$0xff] %vm318, %v1627
      %1636 = vst.msk [vmem:[%s307 + $0x28] sm:$0xff] %vm318, %v1628
      %1637 = vst.msk [vmem:[%s307 + $0x30] sm:$0xff] %vm318, %v1629
      %1638 = vst.msk [vmem:[%s307 + $0x38] sm:$0xff] %vm318, %v1630
      %s1639 = smul.u32 8, %s19
      %p1640 = scmp.lt.s32.totalorder %s1639, 15
      %s1641 = scalar_select %p1640, %s1639, 15
      %s1642 = smul.addr %s1641, 8
      %s1643 = scalar_lea.vmem %s8, %s1642
      // Predicated region
      $region53: #{tpu_custom_call.1} parent=51 // pred_check
        %p1644 = pneg %p210
      $region54: #{tpu_custom_call.1} parent=51 // pred_check_branch
        %1646 = sbr.rel (%p1644) target = $region56
      $region55: #{tpu_custom_call.1} parent=51 // pred_region
        %s1647 = smul.u32 8, %s19
      $region56: #{tpu_custom_call.1} parent=51 // pred_fallthru
        _
    $region52: #{tpu_custom_call.1} parent=5 // pred_fallthru
      _
    %p1648 = scmp.le.s32.totalorder 2, %s14
    // Predicated region
    $region57: #{tpu_custom_call.1} parent=5 // pred_check
      %p1649 = pneg %p1648
    $region58: #{tpu_custom_call.1} parent=5 // pred_check_branch
      %1651 = sbr.rel (%p1649) target = $region60
    $region59: #{tpu_custom_call.1} parent=5 // pred_region
      %s1652 = ssub.s32 %s14, 2
      // Predicated region
      $region61: #{tpu_custom_call.1} parent=59 // pred_check
        %p1653 = pneg %p216
      $region62: #{tpu_custom_call.1} parent=59 // pred_check_branch
        %1655 = sbr.rel (%p1653) target = $region64
      $region63: #{tpu_custom_call.1} parent=59 // pred_region
        %s1656 = smul.u32 8, %s20
        %p1657 = scmp.lt.s32.totalorder %s1656, 15
        %s1658 = scalar_select %p1657, %s1656, 15
        %s1659 = smul.addr %s1658, 8
        %s1660 = scalar_lea.vmem %s8, %s1659
      $region64: #{tpu_custom_call.1} parent=59 // pred_fallthru
        _
    $region60: #{tpu_custom_call.1} parent=5 // pred_fallthru
      _
  $region6: #{tpu_custom_call.1} parent=0 // loop_footer
    %s18 = sadd.s32 1, %s14
  $region7: #{tpu_custom_call.1} parent=0 // loop_footer_branch
    %13 = sbr.rel target = $region3
  $region8: #{tpu_custom_call.1} parent=0 // loop_exit
    _

</llo_original>
